<compile_context>
chip_gen: v7x
topology: tpu7x:2x2x1
jax: 0.10.0
libtpu: 0.0.40
codegen_flags: <defaults>
</compile_context>

<pallas_src>
import math
import functools

import jax
import jax.numpy as jnp
from jax import lax
from jax.experimental import pallas as pl
from jax.experimental.pallas import tpu as pltpu


def _layernorm(x, g, b, eps=1e-5):
    # PyTorch nn.LayerNorm: biased variance, eps inside sqrt.
    mu = jnp.mean(x, axis=-1, keepdims=True)
    var = jnp.mean((x - mu) ** 2, axis=-1, keepdims=True)
    return (x - mu) * lax.rsqrt(var + eps) * g + b


def block_kernel(x_ref, mask_ref,
                 ln1g_ref, ln1b_ref,
                 wqkv_ref, bqkv_ref, wo_ref, bo_ref,
                 ln2g_ref, ln2b_ref,
                 wfc_ref, bfc_ref, wp2_ref, bp2_ref,
                 out_ref,
                 qkv_ref, y_ref,
                 *, n_head, batch, seq):
    x = x_ref[...]                              # (B*T, C) f32, whole slab
    BT, C = x.shape
    T = seq
    hd = C // n_head
    cdt = wqkv_ref.dtype                        # MXU compute dtype (bf16)

    mask_bias = mask_ref[...]                   # (T, T) f32, hoisted additive mask

    # ---------------- attention branch: x + Wo @ softmax(q k^T) v ------------
    h = _layernorm(x, ln1g_ref[...], ln1b_ref[...]).astype(cdt)         # (BT, C)
    # fused QKV projection over all B*T rows; q columns pre-scaled by 1/sqrt(hd)
    qkv = (jnp.dot(h, wqkv_ref[...], preferred_element_type=jnp.float32)
           + bqkv_ref[...])                                             # (BT, 3C) f32
    qkv_ref[...] = qkv.astype(cdt)              # stage once in bf16 VMEM scratch

    # tiny (T, T) attention per (batch, head); static 2x4 unroll at toy size
    for b in range(batch):
        r0 = b * T
        for hh in range(n_head):
            c0 = hh * hd
            q = qkv_ref[r0:r0 + T, c0:c0 + hd]                  # (T, hd) bf16 (scaled)
            k = qkv_ref[r0:r0 + T, C + c0:C + c0 + hd]          # (T, hd) bf16
            v = qkv_ref[r0:r0 + T, 2 * C + c0:2 * C + c0 + hd]  # (T, hd) bf16
            # q @ k^T without materializing a transpose (contract last dims)
            att = lax.dot_general(q, k, (((1,), (1,)), ((), ())),
                                  preferred_element_type=jnp.float32)   # (T, T)
            att = att + mask_bias
            att = att - jnp.max(att, axis=-1, keepdims=True)
            p = jnp.exp(att)
            p = p * pl.reciprocal(jnp.sum(p, axis=-1, keepdims=True), approx=True)
            yh = jnp.dot(p.astype(cdt), v, preferred_element_type=jnp.float32)
            # stage this head's output at its static column offset (no concat)
            y_ref[r0:r0 + T, c0:c0 + hd] = yh.astype(cdt)

    # single K=C output projection over all B*T rows
    attn_out = (jnp.dot(y_ref[...], wo_ref[...],
                        preferred_element_type=jnp.float32) + bo_ref[...])
    x = x + attn_out

    # ---------------- MLP branch: x + W2 @ gelu(W1 @ ln_2(x)) ----------------
    h2 = _layernorm(x, ln2g_ref[...], ln2b_ref[...]).astype(cdt)
    f = jnp.dot(h2, wfc_ref[...], preferred_element_type=jnp.float32) + bfc_ref[...]
    f = 0.5 * f * (1.0 + lax.erf(f * (1.0 / math.sqrt(2.0))))           # exact GELU (f32)
    m = (jnp.dot(f.astype(cdt), wp2_ref[...], preferred_element_type=jnp.float32)
         + bp2_ref[...])

    out_ref[...] = (x + m).astype(out_ref.dtype)


def _prep_params(params, n_head, compute_dtype=jnp.bfloat16):
    """One-time parameter re-layout: PyTorch nn.Linear (out, in) -> (in, out),
    fused (C, 3C) QKV weight with 1/sqrt(hd) folded into the q third, MXU
    weights cast to bf16 (biases / LN params stay f32)."""
    (ln1g, ln1b, w_attn, b_attn, w_proj, b_proj,
     ln2g, ln2b, w_fc, b_fc, w_p2, b_p2) = params
    C = w_proj.shape[0]
    hd = C // n_head
    scale = 1.0 / math.sqrt(hd)
    f32 = jnp.float32

    # fold the attention scale into the q-producing columns
    col_scale = jnp.concatenate([jnp.full((1, C), scale, f32),
                                 jnp.ones((1, 2 * C), f32)], axis=1)     # (1, 3C)
    wqkv = (w_attn.astype(f32).T * col_scale).astype(compute_dtype)      # (C, 3C)
    bqkv = b_attn.astype(f32).reshape(1, 3 * C) * col_scale              # (1, 3C) f32

    wo = w_proj.astype(f32).T.astype(compute_dtype)                      # (C, C)
    bo = b_proj.astype(f32).reshape(1, C)

    wfc = w_fc.astype(f32).T.astype(compute_dtype)                       # (C, 4C)
    bfc = b_fc.astype(f32).reshape(1, 4 * C)
    wp2 = w_p2.astype(f32).T.astype(compute_dtype)                       # (4C, C)
    bp2 = b_p2.astype(f32).reshape(1, C)

    return (ln1g.astype(f32).reshape(1, C), ln1b.astype(f32).reshape(1, C),
            wqkv, bqkv, wo, bo,
            ln2g.astype(f32).reshape(1, C), ln2b.astype(f32).reshape(1, C),
            wfc, bfc, wp2, bp2)


def gpt_block(x, params, n_head):
    B, T, C = x.shape
    kparams = _prep_params(params, n_head)

    # hoisted causal additive mask (finite sentinel, stays f32 in-kernel)
    row = lax.broadcasted_iota(jnp.int32, (T, T), 0)
    col = lax.broadcasted_iota(jnp.int32, (T, T), 1)
    mask_bias = jnp.where(col <= row, 0.0, -1e30).astype(jnp.float32)

    x2d = x.reshape(B * T, C)                    # free wrapper-side reshape
    inputs = (x2d, mask_bias) + kparams

    def full_spec(a):
        # whole array, same block for the single grid step
        return pl.BlockSpec(a.shape, lambda i, nd=a.ndim: (0,) * nd)

    kernel = functools.partial(block_kernel, n_head=n_head, batch=B, seq=T)
    out2d = pl.pallas_call(
        kernel,
        out_shape=jax.ShapeDtypeStruct((B * T, C), x.dtype),
        grid=(1,),
        in_specs=[full_spec(a) for a in inputs],
        out_specs=pl.BlockSpec((B * T, C), lambda i: (0, 0)),
        scratch_shapes=[pltpu.VMEM((B * T, 3 * C), jnp.bfloat16),   # qkv staging
                        pltpu.VMEM((B * T, C), jnp.bfloat16)],      # per-head out staging
        compiler_params=pltpu.CompilerParams(dimension_semantics=("arbitrary",)),
    )(*inputs)
    return out2d.reshape(B, T, C)


def ref_block(x, params, n_head):
    (ln1g, ln1b, wattn, battn, wproj, bproj,
     ln2g, ln2b, wfc, bfc, wp2, bp2) = params
    B, T, C = x.shape
    hd = C // n_head

    def ln(z, g, b):
        mu = z.mean(-1, keepdims=True)
        var = ((z - mu) ** 2).mean(-1, keepdims=True)
        return (z - mu) / jnp.sqrt(var + 1e-5) * g + b

    h = ln(x, ln1g, ln1b)
    qkv = h @ wattn.T + battn
    q, k, v = jnp.split(qkv, 3, axis=-1)
    q = q.reshape(B, T, n_head, hd).transpose(0, 2, 1, 3)
    k = k.reshape(B, T, n_head, hd).transpose(0, 2, 1, 3)
    v = v.reshape(B, T, n_head, hd).transpose(0, 2, 1, 3)
    att = (q @ jnp.swapaxes(k, -2, -1)) / math.sqrt(hd)
    mask = jnp.tril(jnp.ones((T, T), bool))
    att = jnp.where(mask, att, -jnp.inf)
    att = jax.nn.softmax(att, axis=-1)
    y = (att @ v).transpose(0, 2, 1, 3).reshape(B, T, C)
    y = y @ wproj.T + bproj
    x = x + y
    h2 = ln(x, ln2g, ln2b)
    f = h2 @ wfc + 0.0 if False else h2 @ wfc.T + bfc
    f = 0.5 * f * (1.0 + lax.erf(f / math.sqrt(2.0)))
    return x + f @ wp2.T + bp2


if __name__ == "__main__":
    # small GPT config: n_embed=32, n_head=4, block_size>=T, bias=True, dropout=0.0
    B, T, C, n_head = 2, 8, 32, 4

    key = jax.random.PRNGKey(0)
    ks = jax.random.split(key, 8)
    f32 = jnp.float32

    x = jax.random.normal(ks[0], (B, T, C), dtype=f32)

    # deterministic synthetic parameters (PyTorch nn.Linear layout: (out, in))
    ln1_g = jnp.ones((1, C), f32)
    ln1_b = jnp.zeros((1, C), f32)
    w_attn = 0.02 * jax.random.normal(ks[1], (3 * C, C), dtype=f32)
    b_attn = 0.01 * jax.random.normal(ks[2], (1, 3 * C), dtype=f32)
    w_proj = 0.02 * jax.random.normal(ks[3], (C, C), dtype=f32)
    b_proj = 0.01 * jax.random.normal(ks[4], (1, C), dtype=f32)
    ln2_g = jnp.ones((1, C), f32)
    ln2_b = jnp.zeros((1, C), f32)
    w_fc = 0.02 * jax.random.normal(ks[5], (4 * C, C), dtype=f32)
    b_fc = 0.01 * jax.random.normal(ks[6], (1, 4 * C), dtype=f32)
    w_proj2 = 0.02 * jax.random.normal(ks[7], (C, 4 * C), dtype=f32)
    b_proj2 = jnp.zeros((1, C), f32)

    params = (ln1_g, ln1_b, w_attn, b_attn, w_proj, b_proj,
              ln2_g, ln2_b, w_fc, b_fc, w_proj2, b_proj2)

    out = jax.block_until_ready(gpt_block(x, params, n_head))
    ref = jax.block_until_ready(ref_block(x, params, n_head))

    assert out.shape == (B, T, C) and out.dtype == jnp.float32
    # bf16 MXU operands + approx reciprocal -> loosen tolerance vs f32 reference
    assert jnp.allclose(out, ref, atol=2e-2, rtol=2e-2), "mismatch vs pure-JAX reference"
    print("KERNEL_OK")
</pallas_src>

<mosaic_0001>
module attributes {stable_mosaic.version = 11 : i64} {
  func.func @block_kernel(%arg0: i32, %arg1: memref<16x32xf32, #tpu.memory_space<vmem>>, %arg2: memref<8x8xf32, #tpu.memory_space<vmem>>, %arg3: memref<1x32xf32, #tpu.memory_space<vmem>>, %arg4: memref<1x32xf32, #tpu.memory_space<vmem>>, %arg5: memref<32x96xbf16, #tpu.memory_space<vmem>>, %arg6: memref<1x96xf32, #tpu.memory_space<vmem>>, %arg7: memref<32x32xbf16, #tpu.memory_space<vmem>>, %arg8: memref<1x32xf32, #tpu.memory_space<vmem>>, %arg9: memref<1x32xf32, #tpu.memory_space<vmem>>, %arg10: memref<1x32xf32, #tpu.memory_space<vmem>>, %arg11: memref<32x128xbf16, #tpu.memory_space<vmem>>, %arg12: memref<1x128xf32, #tpu.memory_space<vmem>>, %arg13: memref<128x32xbf16, #tpu.memory_space<vmem>>, %arg14: memref<1x32xf32, #tpu.memory_space<vmem>>, %arg15: memref<16x32xf32, #tpu.memory_space<vmem>>, %arg16: memref<16x96xbf16, #tpu.memory_space<vmem>>, %arg17: memref<16x32xbf16, #tpu.memory_space<vmem>>) attributes {dimension_semantics = [#tpu.dimension_semantics<arbitrary>], iteration_bounds = array<i64: 1>, scalar_prefetch = 0 : i64, scratch_operands = 2 : i64, tpu.core_type = #tpu.core_type<tc>, window_params = [{pipeline_mode = #tpu.pipeline_mode<synchronous>, transform_indices = @transform_0, window_bounds = array<i64: 16, 32>}, {pipeline_mode = #tpu.pipeline_mode<synchronous>, transform_indices = @transform_1, window_bounds = array<i64: 8, 8>}, {pipeline_mode = #tpu.pipeline_mode<synchronous>, transform_indices = @transform_2, window_bounds = array<i64: 1, 32>}, {pipeline_mode = #tpu.pipeline_mode<synchronous>, transform_indices = @transform_3, window_bounds = array<i64: 1, 32>}, {pipeline_mode = #tpu.pipeline_mode<synchronous>, transform_indices = @transform_4, window_bounds = array<i64: 32, 96>}, {pipeline_mode = #tpu.pipeline_mode<synchronous>, transform_indices = @transform_5, window_bounds = array<i64: 1, 96>}, {pipeline_mode = #tpu.pipeline_mode<synchronous>, transform_indices = @transform_6, window_bounds = array<i64: 32, 32>}, {pipeline_mode = #tpu.pipeline_mode<synchronous>, transform_indices = @transform_7, window_bounds = array<i64: 1, 32>}, {pipeline_mode = #tpu.pipeline_mode<synchronous>, transform_indices = @transform_8, window_bounds = array<i64: 1, 32>}, {pipeline_mode = #tpu.pipeline_mode<synchronous>, transform_indices = @transform_9, window_bounds = array<i64: 1, 32>}, {pipeline_mode = #tpu.pipeline_mode<synchronous>, transform_indices = @transform_10, window_bounds = array<i64: 32, 128>}, {pipeline_mode = #tpu.pipeline_mode<synchronous>, transform_indices = @transform_11, window_bounds = array<i64: 1, 128>}, {pipeline_mode = #tpu.pipeline_mode<synchronous>, transform_indices = @transform_12, window_bounds = array<i64: 128, 32>}, {pipeline_mode = #tpu.pipeline_mode<synchronous>, transform_indices = @transform_13, window_bounds = array<i64: 1, 32>}, {pipeline_mode = #tpu.pipeline_mode<synchronous>, transform_indices = @transform_14, window_bounds = array<i64: 16, 32>}]} {
    %c0 = arith.constant 0 : index
    %c0_0 = arith.constant 0 : index
    %0 = vector.load %arg1[%c0, %c0_0] : memref<16x32xf32, #tpu.memory_space<vmem>>, vector<16x32xf32>
    %c0_1 = arith.constant 0 : index
    %c0_2 = arith.constant 0 : index
    %1 = vector.load %arg2[%c0_1, %c0_2] : memref<8x8xf32, #tpu.memory_space<vmem>>, vector<8x8xf32>
    %c0_3 = arith.constant 0 : index
    %c0_4 = arith.constant 0 : index
    %2 = vector.load %arg3[%c0_3, %c0_4] : memref<1x32xf32, #tpu.memory_space<vmem>>, vector<1x32xf32>
    %c0_5 = arith.constant 0 : index
    %c0_6 = arith.constant 0 : index
    %3 = vector.load %arg4[%c0_5, %c0_6] : memref<1x32xf32, #tpu.memory_space<vmem>>, vector<1x32xf32>
    %cst = arith.constant dense<0.000000e+00> : vector<16xf32>
    %4 = vector.multi_reduction <add>, %0, %cst [1] : vector<16x32xf32> to vector<16xf32>
    %5 = vector.shape_cast %4 : vector<16xf32> to vector<16x1xf32>
    %cst_7 = arith.constant 3.200000e+01 : f32
    %6 = vector.broadcast %cst_7 : f32 to vector<16x1xf32>
    %7 = arith.divf %5, %6 : vector<16x1xf32>
    %8 = vector.broadcast %7 : vector<16x1xf32> to vector<16x32xf32>
    %9 = arith.subf %0, %8 : vector<16x32xf32>
    %10 = arith.mulf %9, %9 : vector<16x32xf32>
    %cst_8 = arith.constant dense<0.000000e+00> : vector<16xf32>
    %11 = vector.multi_reduction <add>, %10, %cst_8 [1] : vector<16x32xf32> to vector<16xf32>
    %12 = vector.shape_cast %11 : vector<16xf32> to vector<16x1xf32>
    %cst_9 = arith.constant 3.200000e+01 : f32
    %13 = vector.broadcast %cst_9 : f32 to vector<16x1xf32>
    %14 = arith.divf %12, %13 : vector<16x1xf32>
    %15 = vector.broadcast %7 : vector<16x1xf32> to vector<16x32xf32>
    %16 = arith.subf %0, %15 : vector<16x32xf32>
    %cst_10 = arith.constant 9.99999974E-6 : f32
    %17 = vector.broadcast %cst_10 : f32 to vector<16x1xf32>
    %18 = arith.addf %14, %17 : vector<16x1xf32>
    %19 = math.rsqrt %18 : vector<16x1xf32>
    %20 = vector.broadcast %19 : vector<16x1xf32> to vector<16x32xf32>
    %21 = arith.mulf %16, %20 : vector<16x32xf32>
    %22 = vector.broadcast %2 : vector<1x32xf32> to vector<16x32xf32>
    %23 = arith.mulf %21, %22 : vector<16x32xf32>
    %24 = vector.broadcast %3 : vector<1x32xf32> to vector<16x32xf32>
    %25 = arith.addf %23, %24 : vector<16x32xf32>
    %26 = arith.truncf %25 : vector<16x32xf32> to vector<16x32xbf16>
    %c0_11 = arith.constant 0 : index
    %c0_12 = arith.constant 0 : index
    %27 = vector.load %arg5[%c0_11, %c0_12] : memref<32x96xbf16, #tpu.memory_space<vmem>>, vector<32x96xbf16>
    %cst_13 = arith.constant dense<0.000000e+00> : vector<16x96xf32>
    %28 = tpu.matmul %26, %27, %cst_13 {dimension_numbers = #tpu.dot_dimension_numbers<[1], [0], [0], [1], [0, 0, 1, 1], [], []>} : vector<16x32xbf16>, vector<32x96xbf16>, vector<16x96xf32> -> vector<16x96xf32>
    %c0_14 = arith.constant 0 : index
    %c0_15 = arith.constant 0 : index
    %29 = vector.load %arg6[%c0_14, %c0_15] : memref<1x96xf32, #tpu.memory_space<vmem>>, vector<1x96xf32>
    %30 = vector.broadcast %29 : vector<1x96xf32> to vector<16x96xf32>
    %31 = arith.addf %28, %30 : vector<16x96xf32>
    %32 = arith.truncf %31 : vector<16x96xf32> to vector<16x96xbf16>
    %c0_16 = arith.constant 0 : index
    %c0_17 = arith.constant 0 : index
    %33 = vector.load %arg16[%c0_16, %c0_17] : memref<16x96xbf16, #tpu.memory_space<vmem>>, vector<16x96xbf16>
    tpu.vector_store %arg16[%c0_16, %c0_17], %32 {strides = array<i32>} : memref<16x96xbf16, #tpu.memory_space<vmem>>, vector<16x96xbf16>,
    %c0_18 = arith.constant 0 : index
    %c0_19 = arith.constant 0 : index
    %34 = vector.load %arg16[%c0_18, %c0_19] : memref<16x96xbf16, #tpu.memory_space<vmem>>, vector<8x8xbf16>
    %c0_20 = arith.constant 0 : index
    %c32 = arith.constant 32 : index
    %35 = vector.load %arg16[%c0_20, %c32] : memref<16x96xbf16, #tpu.memory_space<vmem>>, vector<8x8xbf16>
    %c0_21 = arith.constant 0 : index
    %c64 = arith.constant 64 : index
    %36 = vector.load %arg16[%c0_21, %c64] : memref<16x96xbf16, #tpu.memory_space<vmem>>, vector<8x8xbf16>
    %cst_22 = arith.constant dense<0.000000e+00> : vector<8x8xf32>
    %37 = tpu.matmul %34, %35, %cst_22 {dimension_numbers = #tpu.dot_dimension_numbers<[1], [1], [0], [0], [0, 0, 1, 0], [], []>} : vector<8x8xbf16>, vector<8x8xbf16>, vector<8x8xf32> -> vector<8x8xf32>
    %38 = arith.addf %37, %1 : vector<8x8xf32>
    %cst_23 = arith.constant dense<0xFF800000> : vector<8xf32>
    %39 = vector.multi_reduction <maximumf>, %38, %cst_23 [1] : vector<8x8xf32> to vector<8xf32>
    %40 = vector.shape_cast %39 : vector<8xf32> to vector<8x1xf32>
    %41 = vector.broadcast %40 : vector<8x1xf32> to vector<8x8xf32>
    %42 = arith.subf %38, %41 : vector<8x8xf32>
    %43 = math.exp %42 : vector<8x8xf32>
    %cst_24 = arith.constant dense<0.000000e+00> : vector<8xf32>
    %44 = vector.multi_reduction <add>, %43, %cst_24 [1] : vector<8x8xf32> to vector<8xf32>
    %45 = vector.shape_cast %44 : vector<8xf32> to vector<8x1xf32>
    %46 = tpu.reciprocal %45 {approx = true} : vector<8x1xf32> -> vector<8x1xf32>
    %47 = vector.broadcast %46 : vector<8x1xf32> to vector<8x8xf32>
    %48 = arith.mulf %43, %47 : vector<8x8xf32>
    %49 = arith.truncf %48 : vector<8x8xf32> to vector<8x8xbf16>
    %cst_25 = arith.constant dense<0.000000e+00> : vector<8x8xf32>
    %50 = tpu.matmul %49, %36, %cst_25 {dimension_numbers = #tpu.dot_dimension_numbers<[1], [0], [0], [1], [0, 0, 1, 1], [], []>} : vector<8x8xbf16>, vector<8x8xbf16>, vector<8x8xf32> -> vector<8x8xf32>
    %51 = arith.truncf %50 : vector<8x8xf32> to vector<8x8xbf16>
    %c0_26 = arith.constant 0 : index
    %c0_27 = arith.constant 0 : index
    %52 = vector.load %arg17[%c0_26, %c0_27] : memref<16x32xbf16, #tpu.memory_space<vmem>>, vector<8x8xbf16>
    tpu.vector_store %arg17[%c0_26, %c0_27], %51 {strides = array<i32>} : memref<16x32xbf16, #tpu.memory_space<vmem>>, vector<8x8xbf16>,
    %c0_28 = arith.constant 0 : index
    %c8 = arith.constant 8 : index
    %53 = vector.load %arg16[%c0_28, %c8] : memref<16x96xbf16, #tpu.memory_space<vmem>>, vector<8x8xbf16>
    %c0_29 = arith.constant 0 : index
    %c40 = arith.constant 40 : index
    %54 = vector.load %arg16[%c0_29, %c40] : memref<16x96xbf16, #tpu.memory_space<vmem>>, vector<8x8xbf16>
    %c0_30 = arith.constant 0 : index
    %c72 = arith.constant 72 : index
    %55 = vector.load %arg16[%c0_30, %c72] : memref<16x96xbf16, #tpu.memory_space<vmem>>, vector<8x8xbf16>
    %cst_31 = arith.constant dense<0.000000e+00> : vector<8x8xf32>
    %56 = tpu.matmul %53, %54, %cst_31 {dimension_numbers = #tpu.dot_dimension_numbers<[1], [1], [0], [0], [0, 0, 1, 0], [], []>} : vector<8x8xbf16>, vector<8x8xbf16>, vector<8x8xf32> -> vector<8x8xf32>
    %57 = arith.addf %56, %1 : vector<8x8xf32>
    %cst_32 = arith.constant dense<0xFF800000> : vector<8xf32>
    %58 = vector.multi_reduction <maximumf>, %57, %cst_32 [1] : vector<8x8xf32> to vector<8xf32>
    %59 = vector.shape_cast %58 : vector<8xf32> to vector<8x1xf32>
    %60 = vector.broadcast %59 : vector<8x1xf32> to vector<8x8xf32>
    %61 = arith.subf %57, %60 : vector<8x8xf32>
    %62 = math.exp %61 : vector<8x8xf32>
    %cst_33 = arith.constant dense<0.000000e+00> : vector<8xf32>
    %63 = vector.multi_reduction <add>, %62, %cst_33 [1] : vector<8x8xf32> to vector<8xf32>
    %64 = vector.shape_cast %63 : vector<8xf32> to vector<8x1xf32>
    %65 = tpu.reciprocal %64 {approx = true} : vector<8x1xf32> -> vector<8x1xf32>
    %66 = vector.broadcast %65 : vector<8x1xf32> to vector<8x8xf32>
    %67 = arith.mulf %62, %66 : vector<8x8xf32>
    %68 = arith.truncf %67 : vector<8x8xf32> to vector<8x8xbf16>
    %cst_34 = arith.constant dense<0.000000e+00> : vector<8x8xf32>
    %69 = tpu.matmul %68, %55, %cst_34 {dimension_numbers = #tpu.dot_dimension_numbers<[1], [0], [0], [1], [0, 0, 1, 1], [], []>} : vector<8x8xbf16>, vector<8x8xbf16>, vector<8x8xf32> -> vector<8x8xf32>
    %70 = arith.truncf %69 : vector<8x8xf32> to vector<8x8xbf16>
    %c0_35 = arith.constant 0 : index
    %c8_36 = arith.constant 8 : index
    %71 = vector.load %arg17[%c0_35, %c8_36] : memref<16x32xbf16, #tpu.memory_space<vmem>>, vector<8x8xbf16>
    tpu.vector_store %arg17[%c0_35, %c8_36], %70 {strides = array<i32>} : memref<16x32xbf16, #tpu.memory_space<vmem>>, vector<8x8xbf16>,
    %c0_37 = arith.constant 0 : index
    %c16 = arith.constant 16 : index
    %72 = vector.load %arg16[%c0_37, %c16] : memref<16x96xbf16, #tpu.memory_space<vmem>>, vector<8x8xbf16>
    %c0_38 = arith.constant 0 : index
    %c48 = arith.constant 48 : index
    %73 = vector.load %arg16[%c0_38, %c48] : memref<16x96xbf16, #tpu.memory_space<vmem>>, vector<8x8xbf16>
    %c0_39 = arith.constant 0 : index
    %c80 = arith.constant 80 : index
    %74 = vector.load %arg16[%c0_39, %c80] : memref<16x96xbf16, #tpu.memory_space<vmem>>, vector<8x8xbf16>
    %cst_40 = arith.constant dense<0.000000e+00> : vector<8x8xf32>
    %75 = tpu.matmul %72, %73, %cst_40 {dimension_numbers = #tpu.dot_dimension_numbers<[1], [1], [0], [0], [0, 0, 1, 0], [], []>} : vector<8x8xbf16>, vector<8x8xbf16>, vector<8x8xf32> -> vector<8x8xf32>
    %76 = arith.addf %75, %1 : vector<8x8xf32>
    %cst_41 = arith.constant dense<0xFF800000> : vector<8xf32>
    %77 = vector.multi_reduction <maximumf>, %76, %cst_41 [1] : vector<8x8xf32> to vector<8xf32>
    %78 = vector.shape_cast %77 : vector<8xf32> to vector<8x1xf32>
    %79 = vector.broadcast %78 : vector<8x1xf32> to vector<8x8xf32>
    %80 = arith.subf %76, %79 : vector<8x8xf32>
    %81 = math.exp %80 : vector<8x8xf32>
    %cst_42 = arith.constant dense<0.000000e+00> : vector<8xf32>
    %82 = vector.multi_reduction <add>, %81, %cst_42 [1] : vector<8x8xf32> to vector<8xf32>
    %83 = vector.shape_cast %82 : vector<8xf32> to vector<8x1xf32>
    %84 = tpu.reciprocal %83 {approx = true} : vector<8x1xf32> -> vector<8x1xf32>
    %85 = vector.broadcast %84 : vector<8x1xf32> to vector<8x8xf32>
    %86 = arith.mulf %81, %85 : vector<8x8xf32>
    %87 = arith.truncf %86 : vector<8x8xf32> to vector<8x8xbf16>
    %cst_43 = arith.constant dense<0.000000e+00> : vector<8x8xf32>
    %88 = tpu.matmul %87, %74, %cst_43 {dimension_numbers = #tpu.dot_dimension_numbers<[1], [0], [0], [1], [0, 0, 1, 1], [], []>} : vector<8x8xbf16>, vector<8x8xbf16>, vector<8x8xf32> -> vector<8x8xf32>
    %89 = arith.truncf %88 : vector<8x8xf32> to vector<8x8xbf16>
    %c0_44 = arith.constant 0 : index
    %c16_45 = arith.constant 16 : index
    %90 = vector.load %arg17[%c0_44, %c16_45] : memref<16x32xbf16, #tpu.memory_space<vmem>>, vector<8x8xbf16>
    tpu.vector_store %arg17[%c0_44, %c16_45], %89 {strides = array<i32>} : memref<16x32xbf16, #tpu.memory_space<vmem>>, vector<8x8xbf16>,
    %c0_46 = arith.constant 0 : index
    %c24 = arith.constant 24 : index
    %91 = vector.load %arg16[%c0_46, %c24] : memref<16x96xbf16, #tpu.memory_space<vmem>>, vector<8x8xbf16>
    %c0_47 = arith.constant 0 : index
    %c56 = arith.constant 56 : index
    %92 = vector.load %arg16[%c0_47, %c56] : memref<16x96xbf16, #tpu.memory_space<vmem>>, vector<8x8xbf16>
    %c0_48 = arith.constant 0 : index
    %c88 = arith.constant 88 : index
    %93 = vector.load %arg16[%c0_48, %c88] : memref<16x96xbf16, #tpu.memory_space<vmem>>, vector<8x8xbf16>
    %cst_49 = arith.constant dense<0.000000e+00> : vector<8x8xf32>
    %94 = tpu.matmul %91, %92, %cst_49 {dimension_numbers = #tpu.dot_dimension_numbers<[1], [1], [0], [0], [0, 0, 1, 0], [], []>} : vector<8x8xbf16>, vector<8x8xbf16>, vector<8x8xf32> -> vector<8x8xf32>
    %95 = arith.addf %94, %1 : vector<8x8xf32>
    %cst_50 = arith.constant dense<0xFF800000> : vector<8xf32>
    %96 = vector.multi_reduction <maximumf>, %95, %cst_50 [1] : vector<8x8xf32> to vector<8xf32>
    %97 = vector.shape_cast %96 : vector<8xf32> to vector<8x1xf32>
    %98 = vector.broadcast %97 : vector<8x1xf32> to vector<8x8xf32>
    %99 = arith.subf %95, %98 : vector<8x8xf32>
    %100 = math.exp %99 : vector<8x8xf32>
    %cst_51 = arith.constant dense<0.000000e+00> : vector<8xf32>
    %101 = vector.multi_reduction <add>, %100, %cst_51 [1] : vector<8x8xf32> to vector<8xf32>
    %102 = vector.shape_cast %101 : vector<8xf32> to vector<8x1xf32>
    %103 = tpu.reciprocal %102 {approx = true} : vector<8x1xf32> -> vector<8x1xf32>
    %104 = vector.broadcast %103 : vector<8x1xf32> to vector<8x8xf32>
    %105 = arith.mulf %100, %104 : vector<8x8xf32>
    %106 = arith.truncf %105 : vector<8x8xf32> to vector<8x8xbf16>
    %cst_52 = arith.constant dense<0.000000e+00> : vector<8x8xf32>
    %107 = tpu.matmul %106, %93, %cst_52 {dimension_numbers = #tpu.dot_dimension_numbers<[1], [0], [0], [1], [0, 0, 1, 1], [], []>} : vector<8x8xbf16>, vector<8x8xbf16>, vector<8x8xf32> -> vector<8x8xf32>
    %108 = arith.truncf %107 : vector<8x8xf32> to vector<8x8xbf16>
    %c0_53 = arith.constant 0 : index
    %c24_54 = arith.constant 24 : index
    %109 = vector.load %arg17[%c0_53, %c24_54] : memref<16x32xbf16, #tpu.memory_space<vmem>>, vector<8x8xbf16>
    tpu.vector_store %arg17[%c0_53, %c24_54], %108 {strides = array<i32>} : memref<16x32xbf16, #tpu.memory_space<vmem>>, vector<8x8xbf16>,
    %c8_55 = arith.constant 8 : index
    %c0_56 = arith.constant 0 : index
    %110 = vector.load %arg16[%c8_55, %c0_56] : memref<16x96xbf16, #tpu.memory_space<vmem>>, vector<8x8xbf16>
    %c8_57 = arith.constant 8 : index
    %c32_58 = arith.constant 32 : index
    %111 = vector.load %arg16[%c8_57, %c32_58] : memref<16x96xbf16, #tpu.memory_space<vmem>>, vector<8x8xbf16>
    %c8_59 = arith.constant 8 : index
    %c64_60 = arith.constant 64 : index
    %112 = vector.load %arg16[%c8_59, %c64_60] : memref<16x96xbf16, #tpu.memory_space<vmem>>, vector<8x8xbf16>
    %cst_61 = arith.constant dense<0.000000e+00> : vector<8x8xf32>
    %113 = tpu.matmul %110, %111, %cst_61 {dimension_numbers = #tpu.dot_dimension_numbers<[1], [1], [0], [0], [0, 0, 1, 0], [], []>} : vector<8x8xbf16>, vector<8x8xbf16>, vector<8x8xf32> -> vector<8x8xf32>
    %114 = arith.addf %113, %1 : vector<8x8xf32>
    %cst_62 = arith.constant dense<0xFF800000> : vector<8xf32>
    %115 = vector.multi_reduction <maximumf>, %114, %cst_62 [1] : vector<8x8xf32> to vector<8xf32>
    %116 = vector.shape_cast %115 : vector<8xf32> to vector<8x1xf32>
    %117 = vector.broadcast %116 : vector<8x1xf32> to vector<8x8xf32>
    %118 = arith.subf %114, %117 : vector<8x8xf32>
    %119 = math.exp %118 : vector<8x8xf32>
    %cst_63 = arith.constant dense<0.000000e+00> : vector<8xf32>
    %120 = vector.multi_reduction <add>, %119, %cst_63 [1] : vector<8x8xf32> to vector<8xf32>
    %121 = vector.shape_cast %120 : vector<8xf32> to vector<8x1xf32>
    %122 = tpu.reciprocal %121 {approx = true} : vector<8x1xf32> -> vector<8x1xf32>
    %123 = vector.broadcast %122 : vector<8x1xf32> to vector<8x8xf32>
    %124 = arith.mulf %119, %123 : vector<8x8xf32>
    %125 = arith.truncf %124 : vector<8x8xf32> to vector<8x8xbf16>
    %cst_64 = arith.constant dense<0.000000e+00> : vector<8x8xf32>
    %126 = tpu.matmul %125, %112, %cst_64 {dimension_numbers = #tpu.dot_dimension_numbers<[1], [0], [0], [1], [0, 0, 1, 1], [], []>} : vector<8x8xbf16>, vector<8x8xbf16>, vector<8x8xf32> -> vector<8x8xf32>
    %127 = arith.truncf %126 : vector<8x8xf32> to vector<8x8xbf16>
    %c8_65 = arith.constant 8 : index
    %c0_66 = arith.constant 0 : index
    %128 = vector.load %arg17[%c8_65, %c0_66] : memref<16x32xbf16, #tpu.memory_space<vmem>>, vector<8x8xbf16>
    tpu.vector_store %arg17[%c8_65, %c0_66], %127 {strides = array<i32>} : memref<16x32xbf16, #tpu.memory_space<vmem>>, vector<8x8xbf16>,
    %c8_67 = arith.constant 8 : index
    %c8_68 = arith.constant 8 : index
    %129 = vector.load %arg16[%c8_67, %c8_68] : memref<16x96xbf16, #tpu.memory_space<vmem>>, vector<8x8xbf16>
    %c8_69 = arith.constant 8 : index
    %c40_70 = arith.constant 40 : index
    %130 = vector.load %arg16[%c8_69, %c40_70] : memref<16x96xbf16, #tpu.memory_space<vmem>>, vector<8x8xbf16>
    %c8_71 = arith.constant 8 : index
    %c72_72 = arith.constant 72 : index
    %131 = vector.load %arg16[%c8_71, %c72_72] : memref<16x96xbf16, #tpu.memory_space<vmem>>, vector<8x8xbf16>
    %cst_73 = arith.constant dense<0.000000e+00> : vector<8x8xf32>
    %132 = tpu.matmul %129, %130, %cst_73 {dimension_numbers = #tpu.dot_dimension_numbers<[1], [1], [0], [0], [0, 0, 1, 0], [], []>} : vector<8x8xbf16>, vector<8x8xbf16>, vector<8x8xf32> -> vector<8x8xf32>
    %133 = arith.addf %132, %1 : vector<8x8xf32>
    %cst_74 = arith.constant dense<0xFF800000> : vector<8xf32>
    %134 = vector.multi_reduction <maximumf>, %133, %cst_74 [1] : vector<8x8xf32> to vector<8xf32>
    %135 = vector.shape_cast %134 : vector<8xf32> to vector<8x1xf32>
    %136 = vector.broadcast %135 : vector<8x1xf32> to vector<8x8xf32>
    %137 = arith.subf %133, %136 : vector<8x8xf32>
    %138 = math.exp %137 : vector<8x8xf32>
    %cst_75 = arith.constant dense<0.000000e+00> : vector<8xf32>
    %139 = vector.multi_reduction <add>, %138, %cst_75 [1] : vector<8x8xf32> to vector<8xf32>
    %140 = vector.shape_cast %139 : vector<8xf32> to vector<8x1xf32>
    %141 = tpu.reciprocal %140 {approx = true} : vector<8x1xf32> -> vector<8x1xf32>
    %142 = vector.broadcast %141 : vector<8x1xf32> to vector<8x8xf32>
    %143 = arith.mulf %138, %142 : vector<8x8xf32>
    %144 = arith.truncf %143 : vector<8x8xf32> to vector<8x8xbf16>
    %cst_76 = arith.constant dense<0.000000e+00> : vector<8x8xf32>
    %145 = tpu.matmul %144, %131, %cst_76 {dimension_numbers = #tpu.dot_dimension_numbers<[1], [0], [0], [1], [0, 0, 1, 1], [], []>} : vector<8x8xbf16>, vector<8x8xbf16>, vector<8x8xf32> -> vector<8x8xf32>
    %146 = arith.truncf %145 : vector<8x8xf32> to vector<8x8xbf16>
    %c8_77 = arith.constant 8 : index
    %c8_78 = arith.constant 8 : index
    %147 = vector.load %arg17[%c8_77, %c8_78] : memref<16x32xbf16, #tpu.memory_space<vmem>>, vector<8x8xbf16>
    tpu.vector_store %arg17[%c8_77, %c8_78], %146 {strides = array<i32>} : memref<16x32xbf16, #tpu.memory_space<vmem>>, vector<8x8xbf16>,
    %c8_79 = arith.constant 8 : index
    %c16_80 = arith.constant 16 : index
    %148 = vector.load %arg16[%c8_79, %c16_80] : memref<16x96xbf16, #tpu.memory_space<vmem>>, vector<8x8xbf16>
    %c8_81 = arith.constant 8 : index
    %c48_82 = arith.constant 48 : index
    %149 = vector.load %arg16[%c8_81, %c48_82] : memref<16x96xbf16, #tpu.memory_space<vmem>>, vector<8x8xbf16>
    %c8_83 = arith.constant 8 : index
    %c80_84 = arith.constant 80 : index
    %150 = vector.load %arg16[%c8_83, %c80_84] : memref<16x96xbf16, #tpu.memory_space<vmem>>, vector<8x8xbf16>
    %cst_85 = arith.constant dense<0.000000e+00> : vector<8x8xf32>
    %151 = tpu.matmul %148, %149, %cst_85 {dimension_numbers = #tpu.dot_dimension_numbers<[1], [1], [0], [0], [0, 0, 1, 0], [], []>} : vector<8x8xbf16>, vector<8x8xbf16>, vector<8x8xf32> -> vector<8x8xf32>
    %152 = arith.addf %151, %1 : vector<8x8xf32>
    %cst_86 = arith.constant dense<0xFF800000> : vector<8xf32>
    %153 = vector.multi_reduction <maximumf>, %152, %cst_86 [1] : vector<8x8xf32> to vector<8xf32>
    %154 = vector.shape_cast %153 : vector<8xf32> to vector<8x1xf32>
    %155 = vector.broadcast %154 : vector<8x1xf32> to vector<8x8xf32>
    %156 = arith.subf %152, %155 : vector<8x8xf32>
    %157 = math.exp %156 : vector<8x8xf32>
    %cst_87 = arith.constant dense<0.000000e+00> : vector<8xf32>
    %158 = vector.multi_reduction <add>, %157, %cst_87 [1] : vector<8x8xf32> to vector<8xf32>
    %159 = vector.shape_cast %158 : vector<8xf32> to vector<8x1xf32>
    %160 = tpu.reciprocal %159 {approx = true} : vector<8x1xf32> -> vector<8x1xf32>
    %161 = vector.broadcast %160 : vector<8x1xf32> to vector<8x8xf32>
    %162 = arith.mulf %157, %161 : vector<8x8xf32>
    %163 = arith.truncf %162 : vector<8x8xf32> to vector<8x8xbf16>
    %cst_88 = arith.constant dense<0.000000e+00> : vector<8x8xf32>
    %164 = tpu.matmul %163, %150, %cst_88 {dimension_numbers = #tpu.dot_dimension_numbers<[1], [0], [0], [1], [0, 0, 1, 1], [], []>} : vector<8x8xbf16>, vector<8x8xbf16>, vector<8x8xf32> -> vector<8x8xf32>
    %165 = arith.truncf %164 : vector<8x8xf32> to vector<8x8xbf16>
    %c8_89 = arith.constant 8 : index
    %c16_90 = arith.constant 16 : index
    %166 = vector.load %arg17[%c8_89, %c16_90] : memref<16x32xbf16, #tpu.memory_space<vmem>>, vector<8x8xbf16>
    tpu.vector_store %arg17[%c8_89, %c16_90], %165 {strides = array<i32>} : memref<16x32xbf16, #tpu.memory_space<vmem>>, vector<8x8xbf16>,
    %c8_91 = arith.constant 8 : index
    %c24_92 = arith.constant 24 : index
    %167 = vector.load %arg16[%c8_91, %c24_92] : memref<16x96xbf16, #tpu.memory_space<vmem>>, vector<8x8xbf16>
    %c8_93 = arith.constant 8 : index
    %c56_94 = arith.constant 56 : index
    %168 = vector.load %arg16[%c8_93, %c56_94] : memref<16x96xbf16, #tpu.memory_space<vmem>>, vector<8x8xbf16>
    %c8_95 = arith.constant 8 : index
    %c88_96 = arith.constant 88 : index
    %169 = vector.load %arg16[%c8_95, %c88_96] : memref<16x96xbf16, #tpu.memory_space<vmem>>, vector<8x8xbf16>
    %cst_97 = arith.constant dense<0.000000e+00> : vector<8x8xf32>
    %170 = tpu.matmul %167, %168, %cst_97 {dimension_numbers = #tpu.dot_dimension_numbers<[1], [1], [0], [0], [0, 0, 1, 0], [], []>} : vector<8x8xbf16>, vector<8x8xbf16>, vector<8x8xf32> -> vector<8x8xf32>
    %171 = arith.addf %170, %1 : vector<8x8xf32>
    %cst_98 = arith.constant dense<0xFF800000> : vector<8xf32>
    %172 = vector.multi_reduction <maximumf>, %171, %cst_98 [1] : vector<8x8xf32> to vector<8xf32>
    %173 = vector.shape_cast %172 : vector<8xf32> to vector<8x1xf32>
    %174 = vector.broadcast %173 : vector<8x1xf32> to vector<8x8xf32>
    %175 = arith.subf %171, %174 : vector<8x8xf32>
    %176 = math.exp %175 : vector<8x8xf32>
    %cst_99 = arith.constant dense<0.000000e+00> : vector<8xf32>
    %177 = vector.multi_reduction <add>, %176, %cst_99 [1] : vector<8x8xf32> to vector<8xf32>
    %178 = vector.shape_cast %177 : vector<8xf32> to vector<8x1xf32>
    %179 = tpu.reciprocal %178 {approx = true} : vector<8x1xf32> -> vector<8x1xf32>
    %180 = vector.broadcast %179 : vector<8x1xf32> to vector<8x8xf32>
    %181 = arith.mulf %176, %180 : vector<8x8xf32>
    %182 = arith.truncf %181 : vector<8x8xf32> to vector<8x8xbf16>
    %cst_100 = arith.constant dense<0.000000e+00> : vector<8x8xf32>
    %183 = tpu.matmul %182, %169, %cst_100 {dimension_numbers = #tpu.dot_dimension_numbers<[1], [0], [0], [1], [0, 0, 1, 1], [], []>} : vector<8x8xbf16>, vector<8x8xbf16>, vector<8x8xf32> -> vector<8x8xf32>
    %184 = arith.truncf %183 : vector<8x8xf32> to vector<8x8xbf16>
    %c8_101 = arith.constant 8 : index
    %c24_102 = arith.constant 24 : index
    %185 = vector.load %arg17[%c8_101, %c24_102] : memref<16x32xbf16, #tpu.memory_space<vmem>>, vector<8x8xbf16>
    tpu.vector_store %arg17[%c8_101, %c24_102], %184 {strides = array<i32>} : memref<16x32xbf16, #tpu.memory_space<vmem>>, vector<8x8xbf16>,
    %c0_103 = arith.constant 0 : index
    %c0_104 = arith.constant 0 : index
    %186 = vector.load %arg17[%c0_103, %c0_104] : memref<16x32xbf16, #tpu.memory_space<vmem>>, vector<16x32xbf16>
    %c0_105 = arith.constant 0 : index
    %c0_106 = arith.constant 0 : index
    %187 = vector.load %arg7[%c0_105, %c0_106] : memref<32x32xbf16, #tpu.memory_space<vmem>>, vector<32x32xbf16>
    %cst_107 = arith.constant dense<0.000000e+00> : vector<16x32xf32>
    %188 = tpu.matmul %186, %187, %cst_107 {dimension_numbers = #tpu.dot_dimension_numbers<[1], [0], [0], [1], [0, 0, 1, 1], [], []>} : vector<16x32xbf16>, vector<32x32xbf16>, vector<16x32xf32> -> vector<16x32xf32>
    %c0_108 = arith.constant 0 : index
    %c0_109 = arith.constant 0 : index
    %189 = vector.load %arg8[%c0_108, %c0_109] : memref<1x32xf32, #tpu.memory_space<vmem>>, vector<1x32xf32>
    %190 = vector.broadcast %189 : vector<1x32xf32> to vector<16x32xf32>
    %191 = arith.addf %188, %190 : vector<16x32xf32>
    %192 = arith.addf %0, %191 : vector<16x32xf32>
    %c0_110 = arith.constant 0 : index
    %c0_111 = arith.constant 0 : index
    %193 = vector.load %arg9[%c0_110, %c0_111] : memref<1x32xf32, #tpu.memory_space<vmem>>, vector<1x32xf32>
    %c0_112 = arith.constant 0 : index
    %c0_113 = arith.constant 0 : index
    %194 = vector.load %arg10[%c0_112, %c0_113] : memref<1x32xf32, #tpu.memory_space<vmem>>, vector<1x32xf32>
    %cst_114 = arith.constant dense<0.000000e+00> : vector<16xf32>
    %195 = vector.multi_reduction <add>, %192, %cst_114 [1] : vector<16x32xf32> to vector<16xf32>
    %196 = vector.shape_cast %195 : vector<16xf32> to vector<16x1xf32>
    %cst_115 = arith.constant 3.200000e+01 : f32
    %197 = vector.broadcast %cst_115 : f32 to vector<16x1xf32>
    %198 = arith.divf %196, %197 : vector<16x1xf32>
    %199 = vector.broadcast %198 : vector<16x1xf32> to vector<16x32xf32>
    %200 = arith.subf %192, %199 : vector<16x32xf32>
    %201 = arith.mulf %200, %200 : vector<16x32xf32>
    %cst_116 = arith.constant dense<0.000000e+00> : vector<16xf32>
    %202 = vector.multi_reduction <add>, %201, %cst_116 [1] : vector<16x32xf32> to vector<16xf32>
    %203 = vector.shape_cast %202 : vector<16xf32> to vector<16x1xf32>
    %cst_117 = arith.constant 3.200000e+01 : f32
    %204 = vector.broadcast %cst_117 : f32 to vector<16x1xf32>
    %205 = arith.divf %203, %204 : vector<16x1xf32>
    %206 = vector.broadcast %198 : vector<16x1xf32> to vector<16x32xf32>
    %207 = arith.subf %192, %206 : vector<16x32xf32>
    %cst_118 = arith.constant 9.99999974E-6 : f32
    %208 = vector.broadcast %cst_118 : f32 to vector<16x1xf32>
    %209 = arith.addf %205, %208 : vector<16x1xf32>
    %210 = math.rsqrt %209 : vector<16x1xf32>
    %211 = vector.broadcast %210 : vector<16x1xf32> to vector<16x32xf32>
    %212 = arith.mulf %207, %211 : vector<16x32xf32>
    %213 = vector.broadcast %193 : vector<1x32xf32> to vector<16x32xf32>
    %214 = arith.mulf %212, %213 : vector<16x32xf32>
    %215 = vector.broadcast %194 : vector<1x32xf32> to vector<16x32xf32>
    %216 = arith.addf %214, %215 : vector<16x32xf32>
    %217 = arith.truncf %216 : vector<16x32xf32> to vector<16x32xbf16>
    %c0_119 = arith.constant 0 : index
    %c0_120 = arith.constant 0 : index
    %218 = vector.load %arg11[%c0_119, %c0_120] : memref<32x128xbf16, #tpu.memory_space<vmem>>, vector<32x128xbf16>
    %cst_121 = arith.constant dense<0.000000e+00> : vector<16x128xf32>
    %219 = tpu.matmul %217, %218, %cst_121 {dimension_numbers = #tpu.dot_dimension_numbers<[1], [0], [0], [1], [0, 0, 1, 1], [], []>} : vector<16x32xbf16>, vector<32x128xbf16>, vector<16x128xf32> -> vector<16x128xf32>
    %c0_122 = arith.constant 0 : index
    %c0_123 = arith.constant 0 : index
    %220 = vector.load %arg12[%c0_122, %c0_123] : memref<1x128xf32, #tpu.memory_space<vmem>>, vector<1x128xf32>
    %221 = vector.broadcast %220 : vector<1x128xf32> to vector<16x128xf32>
    %222 = arith.addf %219, %221 : vector<16x128xf32>
    %cst_124 = arith.constant 5.000000e-01 : f32
    %223 = vector.broadcast %cst_124 : f32 to vector<16x128xf32>
    %224 = arith.mulf %223, %222 : vector<16x128xf32>
    %cst_125 = arith.constant 0.707106769 : f32
    %225 = vector.broadcast %cst_125 : f32 to vector<16x128xf32>
    %226 = arith.mulf %222, %225 : vector<16x128xf32>
    %227 = math.erf %226 : vector<16x128xf32>
    %cst_126 = arith.constant 1.000000e+00 : f32
    %228 = vector.broadcast %cst_126 : f32 to vector<16x128xf32>
    %229 = arith.addf %228, %227 : vector<16x128xf32>
    %230 = arith.mulf %224, %229 : vector<16x128xf32>
    %231 = arith.truncf %230 : vector<16x128xf32> to vector<16x128xbf16>
    %c0_127 = arith.constant 0 : index
    %c0_128 = arith.constant 0 : index
    %232 = vector.load %arg13[%c0_127, %c0_128] : memref<128x32xbf16, #tpu.memory_space<vmem>>, vector<128x32xbf16>
    %cst_129 = arith.constant dense<0.000000e+00> : vector<16x32xf32>
    %233 = tpu.matmul %231, %232, %cst_129 {dimension_numbers = #tpu.dot_dimension_numbers<[1], [0], [0], [1], [0, 0, 1, 1], [], []>} : vector<16x128xbf16>, vector<128x32xbf16>, vector<16x32xf32> -> vector<16x32xf32>
    %c0_130 = arith.constant 0 : index
    %c0_131 = arith.constant 0 : index
    %234 = vector.load %arg14[%c0_130, %c0_131] : memref<1x32xf32, #tpu.memory_space<vmem>>, vector<1x32xf32>
    %235 = vector.broadcast %234 : vector<1x32xf32> to vector<16x32xf32>
    %236 = arith.addf %233, %235 : vector<16x32xf32>
    %237 = arith.addf %192, %236 : vector<16x32xf32>
    %c0_132 = arith.constant 0 : index
    %c0_133 = arith.constant 0 : index
    %238 = vector.load %arg15[%c0_132, %c0_133] : memref<16x32xf32, #tpu.memory_space<vmem>>, vector<16x32xf32>
    tpu.vector_store %arg15[%c0_132, %c0_133], %237 {strides = array<i32>} : memref<16x32xf32, #tpu.memory_space<vmem>>, vector<16x32xf32>,
    return
  }
  func.func @transform_0(%arg0: i32) -> (i32, i32) {
    %c0_i32 = arith.constant 0 : i32
    %c0_i32_0 = arith.constant 0 : i32
    %c0_i32_1 = arith.constant 0 : i32
    return %c0_i32, %c0_i32_0 : i32, i32
  }
  func.func @transform_1(%arg0: i32) -> (i32, i32) {
    %c0_i32 = arith.constant 0 : i32
    %c0_i32_0 = arith.constant 0 : i32
    %c0_i32_1 = arith.constant 0 : i32
    return %c0_i32, %c0_i32_0 : i32, i32
  }
  func.func @transform_2(%arg0: i32) -> (i32, i32) {
    %c0_i32 = arith.constant 0 : i32
    %c0_i32_0 = arith.constant 0 : i32
    %c0_i32_1 = arith.constant 0 : i32
    return %c0_i32, %c0_i32_0 : i32, i32
  }
  func.func @transform_3(%arg0: i32) -> (i32, i32) {
    %c0_i32 = arith.constant 0 : i32
    %c0_i32_0 = arith.constant 0 : i32
    %c0_i32_1 = arith.constant 0 : i32
    return %c0_i32, %c0_i32_0 : i32, i32
  }
  func.func @transform_4(%arg0: i32) -> (i32, i32) {
    %c0_i32 = arith.constant 0 : i32
    %c0_i32_0 = arith.constant 0 : i32
    %c0_i32_1 = arith.constant 0 : i32
    return %c0_i32, %c0_i32_0 : i32, i32
  }
  func.func @transform_5(%arg0: i32) -> (i32, i32) {
    %c0_i32 = arith.constant 0 : i32
    %c0_i32_0 = arith.constant 0 : i32
    %c0_i32_1 = arith.constant 0 : i32
    return %c0_i32, %c0_i32_0 : i32, i32
  }
  func.func @transform_6(%arg0: i32) -> (i32, i32) {
    %c0_i32 = arith.constant 0 : i32
    %c0_i32_0 = arith.constant 0 : i32
    %c0_i32_1 = arith.constant 0 : i32
    return %c0_i32, %c0_i32_0 : i32, i32
  }
  func.func @transform_7(%arg0: i32) -> (i32, i32) {
    %c0_i32 = arith.constant 0 : i32
    %c0_i32_0 = arith.constant 0 : i32
    %c0_i32_1 = arith.constant 0 : i32
    return %c0_i32, %c0_i32_0 : i32, i32
  }
  func.func @transform_8(%arg0: i32) -> (i32, i32) {
    %c0_i32 = arith.constant 0 : i32
    %c0_i32_0 = arith.constant 0 : i32
    %c0_i32_1 = arith.constant 0 : i32
    return %c0_i32, %c0_i32_0 : i32, i32
  }
  func.func @transform_9(%arg0: i32) -> (i32, i32) {
    %c0_i32 = arith.constant 0 : i32
    %c0_i32_0 = arith.constant 0 : i32
    %c0_i32_1 = arith.constant 0 : i32
    return %c0_i32, %c0_i32_0 : i32, i32
  }
  func.func @transform_10(%arg0: i32) -> (i32, i32) {
    %c0_i32 = arith.constant 0 : i32
    %c0_i32_0 = arith.constant 0 : i32
    %c0_i32_1 = arith.constant 0 : i32
    return %c0_i32, %c0_i32_0 : i32, i32
  }
  func.func @transform_11(%arg0: i32) -> (i32, i32) {
    %c0_i32 = arith.constant 0 : i32
    %c0_i32_0 = arith.constant 0 : i32
    %c0_i32_1 = arith.constant 0 : i32
    return %c0_i32, %c0_i32_0 : i32, i32
  }
  func.func @transform_12(%arg0: i32) -> (i32, i32) {
    %c0_i32 = arith.constant 0 : i32
    %c0_i32_0 = arith.constant 0 : i32
    %c0_i32_1 = arith.constant 0 : i32
    return %c0_i32, %c0_i32_0 : i32, i32
  }
  func.func @transform_13(%arg0: i32) -> (i32, i32) {
    %c0_i32 = arith.constant 0 : i32
    %c0_i32_0 = arith.constant 0 : i32
    %c0_i32_1 = arith.constant 0 : i32
    return %c0_i32, %c0_i32_0 : i32, i32
  }
  func.func @transform_14(%arg0: i32) -> (i32, i32) {
    %c0_i32 = arith.constant 0 : i32
    %c0_i32_0 = arith.constant 0 : i32
    %c0_i32_1 = arith.constant 0 : i32
    return %c0_i32, %c0_i32_0 : i32, i32
  }
}

</mosaic_0001>

<llo_original>
// kernel: tpu_custom_call.1
$region0: #{tpu_custom_call.1}
  #allocation0 [shape = 'u32[]', space=smem, size = 0x4, offset = 0x4, fixed_abs, tag = 'smem constant byte address 0x4 - core index']
  #allocation1 [shape = 'u32[144,128]{1,0:T(1,128)}', space=vmem, size = 0x12000, scoped, tag = 'internal scratch']
  #allocation2 [shape = 'bf16[16,96]{1,0:T(16,128)(2,1)}', space=vmem, size = 0x1000, scoped, tag = 'scratch operand']
  #allocation3 [shape = 'bf16[16,32]{1,0:T(16,128)(2,1)}', space=vmem, size = 0x1000, scoped, tag = 'scratch operand']
  %s0 = inlined_call_operand.vmem [shape: f32[16,32], index: 0, kind: input, shape index: {}]
  %s1 = inlined_call_operand.vmem [shape: f32[8,8], index: 1, kind: input, shape index: {}]
  %s2 = inlined_call_operand.vmem [shape: f32[1,32], index: 2, kind: input, shape index: {}]
  %s3 = inlined_call_operand.vmem [shape: f32[1,32], index: 3, kind: input, shape index: {}]
  %s4 = inlined_call_operand.vmem [shape: bf16[32,96], index: 4, kind: input, shape index: {}]
  %s5 = inlined_call_operand.vmem [shape: f32[1,96], index: 5, kind: input, shape index: {}]
  %s6 = inlined_call_operand.vmem [shape: bf16[32,32], index: 6, kind: input, shape index: {}]
  %s7 = inlined_call_operand.vmem [shape: f32[1,32], index: 7, kind: input, shape index: {}]
  %s8 = inlined_call_operand.vmem [shape: f32[1,32], index: 8, kind: input, shape index: {}]
  %s9 = inlined_call_operand.vmem [shape: f32[1,32], index: 9, kind: input, shape index: {}]
  %s10 = inlined_call_operand.vmem [shape: bf16[32,128], index: 10, kind: input, shape index: {}]
  %s11 = inlined_call_operand.vmem [shape: f32[1,128], index: 11, kind: input, shape index: {}]
  %s12 = inlined_call_operand.vmem [shape: bf16[128,32], index: 12, kind: input, shape index: {}]
  %s13 = inlined_call_operand.vmem [shape: f32[1,32], index: 13, kind: input, shape index: {}]
  %s14 = inlined_call_operand.hbm [shape: f32[16,32], index: 14, kind: output, shape index: {}]
  %s15 = sld [smem:[#allocation0]]
  $region66: #{tpu_custom_call.1} parent=0
    _
  %s17 = ssub.s32 1, %s15
  %s18 = scalar_select 0, %s17, %s15
  $region1: #{tpu_custom_call.1} parent=0
    #allocation4 [shape = 'u8[8192]{0}', space=vmem, size = 0x2000, scoped, tag = 'output window, operand 0, single buffered']
    #allocation5 [shape = 's32[1]{0}', space=sflag, size = 0x4, scoped, tag = 'scoped memory for tpu_custom_call.1']
    %19 = vsyncpa [#allocation5], 0
    // Predicated region
    $region2: #{tpu_custom_call.1} parent=1 // pred_check
      _
    $region3: #{tpu_custom_call.1} parent=1 // pred_check_branch
      %21 = sbr.rel (0) target = $region5
    $region4: #{tpu_custom_call.1} parent=1 // pred_region
      _
    $region5: #{tpu_custom_call.1} parent=1 // pred_fallthru
      _
    // Predicated region
    $region6: #{tpu_custom_call.1} parent=1 // pred_check
      _
    $region7: #{tpu_custom_call.1} parent=1 // pred_check_branch
      %23 = sbr.rel (0) target = $region9
    $region8: #{tpu_custom_call.1} parent=1 // pred_region
      _
    $region9: #{tpu_custom_call.1} parent=1 // pred_fallthru
      _
    // Predicated region
    $region10: #{tpu_custom_call.1} parent=1 // pred_check
      _
    $region11: #{tpu_custom_call.1} parent=1 // pred_check_branch
      %25 = sbr.rel (0) target = $region13
    $region12: #{tpu_custom_call.1} parent=1 // pred_region
      _
    $region13: #{tpu_custom_call.1} parent=1 // pred_fallthru
      _
    // Predicated region
    $region14: #{tpu_custom_call.1} parent=1 // pred_check
      _
    $region15: #{tpu_custom_call.1} parent=1 // pred_check_branch
      %27 = sbr.rel (0) target = $region17
    $region16: #{tpu_custom_call.1} parent=1 // pred_region
      _
    $region17: #{tpu_custom_call.1} parent=1 // pred_fallthru
      _
    // Predicated region
    $region18: #{tpu_custom_call.1} parent=1 // pred_check
      _
    $region19: #{tpu_custom_call.1} parent=1 // pred_check_branch
      %29 = sbr.rel (0) target = $region21
    $region20: #{tpu_custom_call.1} parent=1 // pred_region
      _
    $region21: #{tpu_custom_call.1} parent=1 // pred_fallthru
      _
    // Predicated region
    $region22: #{tpu_custom_call.1} parent=1 // pred_check
      _
    $region23: #{tpu_custom_call.1} parent=1 // pred_check_branch
      %31 = sbr.rel (0) target = $region25
    $region24: #{tpu_custom_call.1} parent=1 // pred_region
      _
    $region25: #{tpu_custom_call.1} parent=1 // pred_fallthru
      _
    // Predicated region
    $region26: #{tpu_custom_call.1} parent=1 // pred_check
      _
    $region27: #{tpu_custom_call.1} parent=1 // pred_check_branch
      %33 = sbr.rel (0) target = $region29
    $region28: #{tpu_custom_call.1} parent=1 // pred_region
      _
    $region29: #{tpu_custom_call.1} parent=1 // pred_fallthru
      _
    // Predicated region
    $region30: #{tpu_custom_call.1} parent=1 // pred_check
      _
    $region31: #{tpu_custom_call.1} parent=1 // pred_check_branch
      %35 = sbr.rel (0) target = $region33
    $region32: #{tpu_custom_call.1} parent=1 // pred_region
      _
    $region33: #{tpu_custom_call.1} parent=1 // pred_fallthru
      _
    // Predicated region
    $region34: #{tpu_custom_call.1} parent=1 // pred_check
      _
    $region35: #{tpu_custom_call.1} parent=1 // pred_check_branch
      %37 = sbr.rel (0) target = $region37
    $region36: #{tpu_custom_call.1} parent=1 // pred_region
      _
    $region37: #{tpu_custom_call.1} parent=1 // pred_fallthru
      _
    // Predicated region
    $region38: #{tpu_custom_call.1} parent=1 // pred_check
      _
    $region39: #{tpu_custom_call.1} parent=1 // pred_check_branch
      %39 = sbr.rel (0) target = $region41
    $region40: #{tpu_custom_call.1} parent=1 // pred_region
      _
    $region41: #{tpu_custom_call.1} parent=1 // pred_fallthru
      _
    // Predicated region
    $region42: #{tpu_custom_call.1} parent=1 // pred_check
      _
    $region43: #{tpu_custom_call.1} parent=1 // pred_check_branch
      %41 = sbr.rel (0) target = $region45
    $region44: #{tpu_custom_call.1} parent=1 // pred_region
      _
    $region45: #{tpu_custom_call.1} parent=1 // pred_fallthru
      _
    // Predicated region
    $region46: #{tpu_custom_call.1} parent=1 // pred_check
      _
    $region47: #{tpu_custom_call.1} parent=1 // pred_check_branch
      %43 = sbr.rel (0) target = $region49
    $region48: #{tpu_custom_call.1} parent=1 // pred_region
      _
    $region49: #{tpu_custom_call.1} parent=1 // pred_fallthru
      _
    // Predicated region
    $region50: #{tpu_custom_call.1} parent=1 // pred_check
      _
    $region51: #{tpu_custom_call.1} parent=1 // pred_check_branch
      %45 = sbr.rel (0) target = $region53
    $region52: #{tpu_custom_call.1} parent=1 // pred_region
      _
    $region53: #{tpu_custom_call.1} parent=1 // pred_fallthru
      _
    // Predicated region
    $region54: #{tpu_custom_call.1} parent=1 // pred_check
      _
    $region55: #{tpu_custom_call.1} parent=1 // pred_check_branch
      %47 = sbr.rel (0) target = $region57
    $region56: #{tpu_custom_call.1} parent=1 // pred_region
      _
    $region57: #{tpu_custom_call.1} parent=1 // pred_fallthru
      _
    %v49 = vld [vmem:[%s0] sm:$0xff]
    %v50 = vld [vmem:[%s0 + $0x8] sm:$0xff]
    %v51 = vld [vmem:[%s1] sm:$0xff]
    %v52 = vld [vmem:[%s2] sm:$0x1]
    %v53 = vld [vmem:[%s3] sm:$0x1]
    %vm54 = vcmask 261120
    %v55 = vsel %vm54, %v49, 0.0
    %56 = vadd.xlane.f32.xlu0 %v55
    %v57 = vpop.xlane.xlu0 %56
    %v58 = vsel %vm54, %v50, 0.0
    %59 = vadd.xlane.f32.xlu0 %v58
    %v60 = vpop.xlane.xlu0 %59
    %v61 = vrcp.pop 32.0
    %v62 = vmul.f32 %v57, %v61
    %v63 = vmul.f32 %v60, %v61
    %v64 = vsub.f32 %v49, %v62
    %v65 = vsub.f32 %v50, %v63
    %v66 = vmul.f32 %v64, %v64
    %v67 = vmul.f32 %v65, %v65
    %v68 = vsel %vm54, %v66, 0.0
    %69 = vadd.xlane.f32.xlu0 %v68
    %v70 = vpop.xlane.xlu0 %69
    %v71 = vsel %vm54, %v67, 0.0
    %72 = vadd.xlane.f32.xlu0 %v71
    %v73 = vpop.xlane.xlu0 %72
    %v74 = vmul.f32 %v70, %v61
    %v75 = vmul.f32 %v73, %v61
    %v76 = vadd.f32 %v74, 1e-05
    %v77 = vadd.f32 %v75, 1e-05
    %v78 = vrsqrt.pop %v76
    %v79 = vrsqrt.pop %v77
    %v80 = vmul.f32 %v64, %v78
    %v81 = vmul.f32 %v65, %v79
    %v83 = vlaneseq
    %v84 = vshrl.u32 %v83, 7
    %v85 = vsub.s32 0, %v84
    %v86 = vrot.slane %v52, %v85
    %v88 = vmul.f32 %v80, %v86
    %v89 = vmul.f32 %v81, %v86
    %v91 = vlaneseq
    %v92 = vshrl.u32 %v91, 7
    %v93 = vsub.s32 0, %v92
    %v94 = vrot.slane %v53, %v93
    %v96 = vadd.f32 %v88, %v94
    %v97 = vadd.f32 %v89, %v94
    %v98 = vpack.c.bf16 %v97, %v96
    %v99 = vld [vmem:[%s4] sm:$0xf]
    %v100 = vld [vmem:[%s4 + $0x4] sm:$0xf]
    %v101 = vld [vmem:[%s4 + $0x8] sm:$0xf]
    %v102 = vld [vmem:[%s4 + $0xc] sm:$0xf]
    %v103 = vld [vmem:[%s5] sm:$0x1]
    %v105 = vlaneseq
    %v106 = vshrl.u32 %v105, 7
    %v107 = vsub.s32 0, %v106
    %v108 = vrot.slane %v103, %v107
    %v114 = vunpack.c.l.b16 %v99
    %v115 = vunpack.c.l.b16 %v100
    %v116 = vunpack.c.l.b16 %v101
    %v117 = vunpack.c.l.b16 %v102
    %v118 = vpack.c.b16 %v115, %v114
    %v119 = vpack.c.b16 %v117, %v116
    %v123 = vsel %vm54, %v98, 0
    %125 = vmatprep.subr.bf16.mxu0 0
    %126 = vmatpush1.bf16.msra.mxu0 %v118
    %127 = vmatprep.subr.bf16.mxu0 0
    %128 = vmatpush1.bf16.msra.mxu0 %v119
    %129 = vmatprep.subr.bf16.mxu0 0
    %130 = vmatpush1.bf16.msra.mxu0 0
    %131 = vmatprep.subr.bf16.mxu0 0
    %132 = vmatpush1.bf16.msra.mxu0 0
    %133 = vmatprep.subr.bf16.mxu0 0
    %134 = vmatpush1.bf16.msra.mxu0 0
    %135 = vmatprep.subr.bf16.mxu0 0
    %136 = vmatpush1.bf16.msra.mxu0 0
    %137 = vmatprep.subr.bf16.mxu0 0
    %138 = vmatpush1.bf16.msra.mxu0 0
    %139 = vmatprep.subr.bf16.mxu0 0
    %140 = vmatpush1.bf16.msra.mxu0 0
    %141 = vmatprep.subr.bf16.mxu0 0
    %142 = vmatpush1.bf16.msra.mxu0 0
    %143 = vmatprep.subr.bf16.mxu0 0
    %144 = vmatpush1.bf16.msra.mxu0 0
    %145 = vmatprep.subr.bf16.mxu0 0
    %146 = vmatpush1.bf16.msra.mxu0 0
    %147 = vmatprep.subr.bf16.mxu0 0
    %148 = vmatpush1.bf16.msra.mxu0 0
    %149 = vmatprep.subr.bf16.mxu0 0
    %150 = vmatpush1.bf16.msra.mxu0 0
    %151 = vmatprep.subr.bf16.mxu0 0
    %152 = vmatpush1.bf16.msra.mxu0 0
    %153 = vmatprep.subr.bf16.mxu0 0
    %154 = vmatpush1.bf16.msra.mxu0 0
    %155 = vmatprep.subr.bf16.mxu0 0
    %156 = vmatpush1.bf16.msra.mxu0 0
    %157 = vmatprep.mubr.bf16.mxu0 0
    %158 = vmatmul.mubr.bf16.gmra.mrb[0].mxu0 %v123
    %v159 = vpop.f32.mrb[0].mxu0
    %v160 = vadd.f32 %v108, %v159
    %v161 = vpop.f32.mrb[0].mxu0
    %v162 = vpop.f32.mrb[0].mxu0
    %v163 = vadd.f32 %v108, %v162
    %v164 = vpop.f32.mrb[0].mxu0
    %165 = vdwg.mxu0
    %v166 = vpack.c.bf16 %v163, %v160
    %vm167 = vcmask 785408
    %168 = vst.msk [vmem:[#allocation2] sm:$0xff] %vm167, %v166
    %v169 = vld [vmem:[#allocation2] sm:$0xf]
    %171 = vrot.lane.b32.xlu0 %v169, 96
    %v172 = vpop.permute.xlu0 %171
    %vm173 = vcmask 64512
    %v175 = vsel %vm173, %v169, 0
    %v178 = vsel %vm173, %v172, 0
    %180 = vmatprep.subr.bf16.mxu0 0
    %181 = vmatpush1.bf16.xpose.msra.mxu0 %v178
    %182 = vmatprep.subr.bf16.mxu0 0
    %183 = vmatpush1.bf16.xpose.msra.mxu0 0
    %184 = vmatprep.subr.bf16.mxu0 0
    %185 = vmatpush1.bf16.xpose.msra.mxu0 0
    %186 = vmatprep.subr.bf16.mxu0 0
    %187 = vmatpush1.bf16.xpose.msra.mxu0 0
    %188 = vmatprep.subr.bf16.mxu0 0
    %189 = vmatpush1.bf16.xpose.msra.mxu0 0
    %190 = vmatprep.subr.bf16.mxu0 0
    %191 = vmatpush1.bf16.xpose.msra.mxu0 0
    %192 = vmatprep.subr.bf16.mxu0 0
    %193 = vmatpush1.bf16.xpose.msra.mxu0 0
    %194 = vmatprep.subr.bf16.mxu0 0
    %195 = vmatpush1.bf16.xpose.msra.mxu0 0
    %196 = vmatprep.subr.bf16.mxu0 0
    %197 = vmatpush1.bf16.xpose.msra.mxu0 0
    %198 = vmatprep.subr.bf16.mxu0 0
    %199 = vmatpush1.bf16.xpose.msra.mxu0 0
    %200 = vmatprep.subr.bf16.mxu0 0
    %201 = vmatpush1.bf16.xpose.msra.mxu0 0
    %202 = vmatprep.subr.bf16.mxu0 0
    %203 = vmatpush1.bf16.xpose.msra.mxu0 0
    %204 = vmatprep.subr.bf16.mxu0 0
    %205 = vmatpush1.bf16.xpose.msra.mxu0 0
    %206 = vmatprep.subr.bf16.mxu0 0
    %207 = vmatpush1.bf16.xpose.msra.mxu0 0
    %208 = vmatprep.subr.bf16.mxu0 0
    %209 = vmatpush1.bf16.xpose.msra.mxu0 0
    %210 = vmatprep.subr.bf16.mxu0 0
    %211 = vmatpush1.bf16.xpose.msra.mxu0 0
    %212 = vmatprep.mubr.bf16.mxu0 0
    %213 = vmatmul.mubr.bf16.gmra.mrb[0].mxu0 %v175
    %v214 = vpop.f32.mrb[0].mxu0
    %v215 = vadd.f32 %v51, %v214
    %v216 = vpop.f32.mrb[0].mxu0
    %v217 = vpop.f32.mrb[0].mxu0
    %v218 = vpop.f32.mrb[0].mxu0
    %219 = vdwg.mxu0
    %v220 = vsel %vm173, %v215, -inf
    %221 = vmax.xlane.f32.xlu0 %v220
    %v222 = vpop.xlane.xlu0 %221
    %v223 = vsub.f32 %v215, %v222
    %v224 = vmul.f32 %v223, 1.442695
    %v225 = vpow.pop %v224
    %v226 = vsel %vm173, %v225, 0.0
    %227 = vadd.xlane.f32.xlu0 %v226
    %v228 = vpop.xlane.xlu0 %227
    %v229 = vrcp.pop %v228
    %v230 = vmul.f32 %v225, %v229
    %v231 = vpack.c.bf16 %v230, %v230
    %232 = vrot.lane.b32.xlu0 %v169, 64
    %v233 = vpop.permute.xlu0 %232
    %v235 = vsel %vm173, %v231, 0
    %vm237 = vcmask 1043456
    %v239 = vsel %vm237, %v233, 0
    %241 = vmatprep.subr.bf16.mxu0 0
    %242 = vmatpush1.bf16.msra.mxu0 %v239
    %243 = vmatprep.subr.bf16.mxu0 0
    %244 = vmatpush1.bf16.msra.mxu0 0
    %245 = vmatprep.subr.bf16.mxu0 0
    %246 = vmatpush1.bf16.msra.mxu0 0
    %247 = vmatprep.subr.bf16.mxu0 0
    %248 = vmatpush1.bf16.msra.mxu0 0
    %249 = vmatprep.subr.bf16.mxu0 0
    %250 = vmatpush1.bf16.msra.mxu0 0
    %251 = vmatprep.subr.bf16.mxu0 0
    %252 = vmatpush1.bf16.msra.mxu0 0
    %253 = vmatprep.subr.bf16.mxu0 0
    %254 = vmatpush1.bf16.msra.mxu0 0
    %255 = vmatprep.subr.bf16.mxu0 0
    %256 = vmatpush1.bf16.msra.mxu0 0
    %257 = vmatprep.subr.bf16.mxu0 0
    %258 = vmatpush1.bf16.msra.mxu0 0
    %259 = vmatprep.subr.bf16.mxu0 0
    %260 = vmatpush1.bf16.msra.mxu0 0
    %261 = vmatprep.subr.bf16.mxu0 0
    %262 = vmatpush1.bf16.msra.mxu0 0
    %263 = vmatprep.subr.bf16.mxu0 0
    %264 = vmatpush1.bf16.msra.mxu0 0
    %265 = vmatprep.subr.bf16.mxu0 0
    %266 = vmatpush1.bf16.msra.mxu0 0
    %267 = vmatprep.subr.bf16.mxu0 0
    %268 = vmatpush1.bf16.msra.mxu0 0
    %269 = vmatprep.subr.bf16.mxu0 0
    %270 = vmatpush1.bf16.msra.mxu0 0
    %271 = vmatprep.subr.bf16.mxu0 0
    %272 = vmatpush1.bf16.msra.mxu0 0
    %273 = vmatprep.mubr.bf16.mxu0 0
    %274 = vmatmul.mubr.bf16.gmra.mrb[0].mxu0 %v235
    %v275 = vpop.f32.mrb[0].mxu0
    %v276 = vadd.f32 0.0, %v275
    %v277 = vpop.f32.mrb[0].mxu0
    %v278 = vpop.f32.mrb[0].mxu0
    %v279 = vpop.f32.mrb[0].mxu0
    %280 = vdwg.mxu0
    %v281 = vpack.c.bf16 %v276, %v276
    %vm282 = vcmask 60416
    %283 = vst.msk [vmem:[#allocation3] sm:$0xf] %vm282, %v281
    %v284 = vld [vmem:[#allocation2] sm:$0xf]
    %286 = vrot.lane.b32.xlu0 %v284, 120
    %v287 = vpop.permute.xlu0 %286
    %288 = vrot.lane.b32.xlu0 %v284, 88
    %v289 = vpop.permute.xlu0 %288
    %v291 = vsel %vm173, %v287, 0
    %v294 = vsel %vm173, %v289, 0
    %296 = vmatprep.subr.bf16.mxu0 0
    %297 = vmatpush1.bf16.xpose.msra.mxu0 %v294
    %298 = vmatprep.subr.bf16.mxu0 0
    %299 = vmatpush1.bf16.xpose.msra.mxu0 0
    %300 = vmatprep.subr.bf16.mxu0 0
    %301 = vmatpush1.bf16.xpose.msra.mxu0 0
    %302 = vmatprep.subr.bf16.mxu0 0
    %303 = vmatpush1.bf16.xpose.msra.mxu0 0
    %304 = vmatprep.subr.bf16.mxu0 0
    %305 = vmatpush1.bf16.xpose.msra.mxu0 0
    %306 = vmatprep.subr.bf16.mxu0 0
    %307 = vmatpush1.bf16.xpose.msra.mxu0 0
    %308 = vmatprep.subr.bf16.mxu0 0
    %309 = vmatpush1.bf16.xpose.msra.mxu0 0
    %310 = vmatprep.subr.bf16.mxu0 0
    %311 = vmatpush1.bf16.xpose.msra.mxu0 0
    %312 = vmatprep.subr.bf16.mxu0 0
    %313 = vmatpush1.bf16.xpose.msra.mxu0 0
    %314 = vmatprep.subr.bf16.mxu0 0
    %315 = vmatpush1.bf16.xpose.msra.mxu0 0
    %316 = vmatprep.subr.bf16.mxu0 0
    %317 = vmatpush1.bf16.xpose.msra.mxu0 0
    %318 = vmatprep.subr.bf16.mxu0 0
    %319 = vmatpush1.bf16.xpose.msra.mxu0 0
    %320 = vmatprep.subr.bf16.mxu0 0
    %321 = vmatpush1.bf16.xpose.msra.mxu0 0
    %322 = vmatprep.subr.bf16.mxu0 0
    %323 = vmatpush1.bf16.xpose.msra.mxu0 0
    %324 = vmatprep.subr.bf16.mxu0 0
    %325 = vmatpush1.bf16.xpose.msra.mxu0 0
    %326 = vmatprep.subr.bf16.mxu0 0
    %327 = vmatpush1.bf16.xpose.msra.mxu0 0
    %328 = vmatprep.mubr.bf16.mxu0 0
    %329 = vmatmul.mubr.bf16.gmra.mrb[0].mxu0 %v291
    %v330 = vpop.f32.mrb[0].mxu0
    %v331 = vadd.f32 %v51, %v330
    %v332 = vpop.f32.mrb[0].mxu0
    %v333 = vpop.f32.mrb[0].mxu0
    %v334 = vpop.f32.mrb[0].mxu0
    %335 = vdwg.mxu0
    %v336 = vsel %vm173, %v331, -inf
    %337 = vmax.xlane.f32.xlu0 %v336
    %v338 = vpop.xlane.xlu0 %337
    %v339 = vsub.f32 %v331, %v338
    %v340 = vmul.f32 %v339, 1.442695
    %v341 = vpow.pop %v340
    %v342 = vsel %vm173, %v341, 0.0
    %343 = vadd.xlane.f32.xlu0 %v342
    %v344 = vpop.xlane.xlu0 %343
    %v345 = vrcp.pop %v344
    %v346 = vmul.f32 %v341, %v345
    %v347 = vpack.c.bf16 %v346, %v346
    %348 = vrot.lane.b32.xlu0 %v284, 56
    %v349 = vpop.permute.xlu0 %348
    %v351 = vsel %vm173, %v347, 0
    %v354 = vsel %vm237, %v349, 0
    %356 = vmatprep.subr.bf16.mxu0 0
    %357 = vmatpush1.bf16.msra.mxu0 %v354
    %358 = vmatprep.subr.bf16.mxu0 0
    %359 = vmatpush1.bf16.msra.mxu0 0
    %360 = vmatprep.subr.bf16.mxu0 0
    %361 = vmatpush1.bf16.msra.mxu0 0
    %362 = vmatprep.subr.bf16.mxu0 0
    %363 = vmatpush1.bf16.msra.mxu0 0
    %364 = vmatprep.subr.bf16.mxu0 0
    %365 = vmatpush1.bf16.msra.mxu0 0
    %366 = vmatprep.subr.bf16.mxu0 0
    %367 = vmatpush1.bf16.msra.mxu0 0
    %368 = vmatprep.subr.bf16.mxu0 0
    %369 = vmatpush1.bf16.msra.mxu0 0
    %370 = vmatprep.subr.bf16.mxu0 0
    %371 = vmatpush1.bf16.msra.mxu0 0
    %372 = vmatprep.subr.bf16.mxu0 0
    %373 = vmatpush1.bf16.msra.mxu0 0
    %374 = vmatprep.subr.bf16.mxu0 0
    %375 = vmatpush1.bf16.msra.mxu0 0
    %376 = vmatprep.subr.bf16.mxu0 0
    %377 = vmatpush1.bf16.msra.mxu0 0
    %378 = vmatprep.subr.bf16.mxu0 0
    %379 = vmatpush1.bf16.msra.mxu0 0
    %380 = vmatprep.subr.bf16.mxu0 0
    %381 = vmatpush1.bf16.msra.mxu0 0
    %382 = vmatprep.subr.bf16.mxu0 0
    %383 = vmatpush1.bf16.msra.mxu0 0
    %384 = vmatprep.subr.bf16.mxu0 0
    %385 = vmatpush1.bf16.msra.mxu0 0
    %386 = vmatprep.subr.bf16.mxu0 0
    %387 = vmatpush1.bf16.msra.mxu0 0
    %388 = vmatprep.mubr.bf16.mxu0 0
    %389 = vmatmul.mubr.bf16.gmra.mrb[0].mxu0 %v351
    %v390 = vpop.f32.mrb[0].mxu0
    %v391 = vadd.f32 0.0, %v390
    %v392 = vpop.f32.mrb[0].mxu0
    %v393 = vpop.f32.mrb[0].mxu0
    %v394 = vpop.f32.mrb[0].mxu0
    %395 = vdwg.mxu0
    %v396 = vpack.c.bf16 %v391, %v391
    %398 = vrot.lane.b32.xlu0 %v396, 8
    %v399 = vpop.permute.xlu0 %398
    %vm401 = vcmask 126016
    %402 = vst.msk [vmem:[#allocation3] sm:$0xf] %vm401, %v399
    %v403 = vld [vmem:[#allocation2] sm:$0xf]
    %405 = vrot.lane.b32.xlu0 %v403, 112
    %v406 = vpop.permute.xlu0 %405
    %407 = vrot.lane.b32.xlu0 %v403, 80
    %v408 = vpop.permute.xlu0 %407
    %v410 = vsel %vm173, %v406, 0
    %v413 = vsel %vm173, %v408, 0
    %415 = vmatprep.subr.bf16.mxu0 0
    %416 = vmatpush1.bf16.xpose.msra.mxu0 %v413
    %417 = vmatprep.subr.bf16.mxu0 0
    %418 = vmatpush1.bf16.xpose.msra.mxu0 0
    %419 = vmatprep.subr.bf16.mxu0 0
    %420 = vmatpush1.bf16.xpose.msra.mxu0 0
    %421 = vmatprep.subr.bf16.mxu0 0
    %422 = vmatpush1.bf16.xpose.msra.mxu0 0
    %423 = vmatprep.subr.bf16.mxu0 0
    %424 = vmatpush1.bf16.xpose.msra.mxu0 0
    %425 = vmatprep.subr.bf16.mxu0 0
    %426 = vmatpush1.bf16.xpose.msra.mxu0 0
    %427 = vmatprep.subr.bf16.mxu0 0
    %428 = vmatpush1.bf16.xpose.msra.mxu0 0
    %429 = vmatprep.subr.bf16.mxu0 0
    %430 = vmatpush1.bf16.xpose.msra.mxu0 0
    %431 = vmatprep.subr.bf16.mxu0 0
    %432 = vmatpush1.bf16.xpose.msra.mxu0 0
    %433 = vmatprep.subr.bf16.mxu0 0
    %434 = vmatpush1.bf16.xpose.msra.mxu0 0
    %435 = vmatprep.subr.bf16.mxu0 0
    %436 = vmatpush1.bf16.xpose.msra.mxu0 0
    %437 = vmatprep.subr.bf16.mxu0 0
    %438 = vmatpush1.bf16.xpose.msra.mxu0 0
    %439 = vmatprep.subr.bf16.mxu0 0
    %440 = vmatpush1.bf16.xpose.msra.mxu0 0
    %441 = vmatprep.subr.bf16.mxu0 0
    %442 = vmatpush1.bf16.xpose.msra.mxu0 0
    %443 = vmatprep.subr.bf16.mxu0 0
    %444 = vmatpush1.bf16.xpose.msra.mxu0 0
    %445 = vmatprep.subr.bf16.mxu0 0
    %446 = vmatpush1.bf16.xpose.msra.mxu0 0
    %447 = vmatprep.mubr.bf16.mxu0 0
    %448 = vmatmul.mubr.bf16.gmra.mrb[0].mxu0 %v410
    %v449 = vpop.f32.mrb[0].mxu0
    %v450 = vadd.f32 %v51, %v449
    %v451 = vpop.f32.mrb[0].mxu0
    %v452 = vpop.f32.mrb[0].mxu0
    %v453 = vpop.f32.mrb[0].mxu0
    %454 = vdwg.mxu0
    %v455 = vsel %vm173, %v450, -inf
    %456 = vmax.xlane.f32.xlu0 %v455
    %v457 = vpop.xlane.xlu0 %456
    %v458 = vsub.f32 %v450, %v457
    %v459 = vmul.f32 %v458, 1.442695
    %v460 = vpow.pop %v459
    %v461 = vsel %vm173, %v460, 0.0
    %462 = vadd.xlane.f32.xlu0 %v461
    %v463 = vpop.xlane.xlu0 %462
    %v464 = vrcp.pop %v463
    %v465 = vmul.f32 %v460, %v464
    %v466 = vpack.c.bf16 %v465, %v465
    %467 = vrot.lane.b32.xlu0 %v403, 48
    %v468 = vpop.permute.xlu0 %467
    %v470 = vsel %vm173, %v466, 0
    %v473 = vsel %vm237, %v468, 0
    %475 = vmatprep.subr.bf16.mxu0 0
    %476 = vmatpush1.bf16.msra.mxu0 %v473
    %477 = vmatprep.subr.bf16.mxu0 0
    %478 = vmatpush1.bf16.msra.mxu0 0
    %479 = vmatprep.subr.bf16.mxu0 0
    %480 = vmatpush1.bf16.msra.mxu0 0
    %481 = vmatprep.subr.bf16.mxu0 0
    %482 = vmatpush1.bf16.msra.mxu0 0
    %483 = vmatprep.subr.bf16.mxu0 0
    %484 = vmatpush1.bf16.msra.mxu0 0
    %485 = vmatprep.subr.bf16.mxu0 0
    %486 = vmatpush1.bf16.msra.mxu0 0
    %487 = vmatprep.subr.bf16.mxu0 0
    %488 = vmatpush1.bf16.msra.mxu0 0
    %489 = vmatprep.subr.bf16.mxu0 0
    %490 = vmatpush1.bf16.msra.mxu0 0
    %491 = vmatprep.subr.bf16.mxu0 0
    %492 = vmatpush1.bf16.msra.mxu0 0
    %493 = vmatprep.subr.bf16.mxu0 0
    %494 = vmatpush1.bf16.msra.mxu0 0
    %495 = vmatprep.subr.bf16.mxu0 0
    %496 = vmatpush1.bf16.msra.mxu0 0
    %497 = vmatprep.subr.bf16.mxu0 0
    %498 = vmatpush1.bf16.msra.mxu0 0
    %499 = vmatprep.subr.bf16.mxu0 0
    %500 = vmatpush1.bf16.msra.mxu0 0
    %501 = vmatprep.subr.bf16.mxu0 0
    %502 = vmatpush1.bf16.msra.mxu0 0
    %503 = vmatprep.subr.bf16.mxu0 0
    %504 = vmatpush1.bf16.msra.mxu0 0
    %505 = vmatprep.subr.bf16.mxu0 0
    %506 = vmatpush1.bf16.msra.mxu0 0
    %507 = vmatprep.mubr.bf16.mxu0 0
    %508 = vmatmul.mubr.bf16.gmra.mrb[0].mxu0 %v470
    %v509 = vpop.f32.mrb[0].mxu0
    %v510 = vadd.f32 0.0, %v509
    %v511 = vpop.f32.mrb[0].mxu0
    %v512 = vpop.f32.mrb[0].mxu0
    %v513 = vpop.f32.mrb[0].mxu0
    %514 = vdwg.mxu0
    %v515 = vpack.c.bf16 %v510, %v510
    %517 = vrot.lane.b32.xlu0 %v515, 16
    %v518 = vpop.permute.xlu0 %517
    %vm520 = vcmask 191616
    %521 = vst.msk [vmem:[#allocation3] sm:$0xf] %vm520, %v518
    %v522 = vld [vmem:[#allocation2] sm:$0xf]
    %524 = vrot.lane.b32.xlu0 %v522, 104
    %v525 = vpop.permute.xlu0 %524
    %526 = vrot.lane.b32.xlu0 %v522, 72
    %v527 = vpop.permute.xlu0 %526
    %v529 = vsel %vm173, %v525, 0
    %v532 = vsel %vm173, %v527, 0
    %534 = vmatprep.subr.bf16.mxu0 0
    %535 = vmatpush1.bf16.xpose.msra.mxu0 %v532
    %536 = vmatprep.subr.bf16.mxu0 0
    %537 = vmatpush1.bf16.xpose.msra.mxu0 0
    %538 = vmatprep.subr.bf16.mxu0 0
    %539 = vmatpush1.bf16.xpose.msra.mxu0 0
    %540 = vmatprep.subr.bf16.mxu0 0
    %541 = vmatpush1.bf16.xpose.msra.mxu0 0
    %542 = vmatprep.subr.bf16.mxu0 0
    %543 = vmatpush1.bf16.xpose.msra.mxu0 0
    %544 = vmatprep.subr.bf16.mxu0 0
    %545 = vmatpush1.bf16.xpose.msra.mxu0 0
    %546 = vmatprep.subr.bf16.mxu0 0
    %547 = vmatpush1.bf16.xpose.msra.mxu0 0
    %548 = vmatprep.subr.bf16.mxu0 0
    %549 = vmatpush1.bf16.xpose.msra.mxu0 0
    %550 = vmatprep.subr.bf16.mxu0 0
    %551 = vmatpush1.bf16.xpose.msra.mxu0 0
    %552 = vmatprep.subr.bf16.mxu0 0
    %553 = vmatpush1.bf16.xpose.msra.mxu0 0
    %554 = vmatprep.subr.bf16.mxu0 0
    %555 = vmatpush1.bf16.xpose.msra.mxu0 0
    %556 = vmatprep.subr.bf16.mxu0 0
    %557 = vmatpush1.bf16.xpose.msra.mxu0 0
    %558 = vmatprep.subr.bf16.mxu0 0
    %559 = vmatpush1.bf16.xpose.msra.mxu0 0
    %560 = vmatprep.subr.bf16.mxu0 0
    %561 = vmatpush1.bf16.xpose.msra.mxu0 0
    %562 = vmatprep.subr.bf16.mxu0 0
    %563 = vmatpush1.bf16.xpose.msra.mxu0 0
    %564 = vmatprep.subr.bf16.mxu0 0
    %565 = vmatpush1.bf16.xpose.msra.mxu0 0
    %566 = vmatprep.mubr.bf16.mxu0 0
    %567 = vmatmul.mubr.bf16.gmra.mrb[0].mxu0 %v529
    %v568 = vpop.f32.mrb[0].mxu0
    %v569 = vadd.f32 %v51, %v568
    %v570 = vpop.f32.mrb[0].mxu0
    %v571 = vpop.f32.mrb[0].mxu0
    %v572 = vpop.f32.mrb[0].mxu0
    %573 = vdwg.mxu0
    %v574 = vsel %vm173, %v569, -inf
    %575 = vmax.xlane.f32.xlu0 %v574
    %v576 = vpop.xlane.xlu0 %575
    %v577 = vsub.f32 %v569, %v576
    %v578 = vmul.f32 %v577, 1.442695
    %v579 = vpow.pop %v578
    %v580 = vsel %vm173, %v579, 0.0
    %581 = vadd.xlane.f32.xlu0 %v580
    %v582 = vpop.xlane.xlu0 %581
    %v583 = vrcp.pop %v582
    %v584 = vmul.f32 %v579, %v583
    %v585 = vpack.c.bf16 %v584, %v584
    %586 = vrot.lane.b32.xlu0 %v522, 40
    %v587 = vpop.permute.xlu0 %586
    %v589 = vsel %vm173, %v585, 0
    %v592 = vsel %vm237, %v587, 0
    %594 = vmatprep.subr.bf16.mxu0 0
    %595 = vmatpush1.bf16.msra.mxu0 %v592
    %596 = vmatprep.subr.bf16.mxu0 0
    %597 = vmatpush1.bf16.msra.mxu0 0
    %598 = vmatprep.subr.bf16.mxu0 0
    %599 = vmatpush1.bf16.msra.mxu0 0
    %600 = vmatprep.subr.bf16.mxu0 0
    %601 = vmatpush1.bf16.msra.mxu0 0
    %602 = vmatprep.subr.bf16.mxu0 0
    %603 = vmatpush1.bf16.msra.mxu0 0
    %604 = vmatprep.subr.bf16.mxu0 0
    %605 = vmatpush1.bf16.msra.mxu0 0
    %606 = vmatprep.subr.bf16.mxu0 0
    %607 = vmatpush1.bf16.msra.mxu0 0
    %608 = vmatprep.subr.bf16.mxu0 0
    %609 = vmatpush1.bf16.msra.mxu0 0
    %610 = vmatprep.subr.bf16.mxu0 0
    %611 = vmatpush1.bf16.msra.mxu0 0
    %612 = vmatprep.subr.bf16.mxu0 0
    %613 = vmatpush1.bf16.msra.mxu0 0
    %614 = vmatprep.subr.bf16.mxu0 0
    %615 = vmatpush1.bf16.msra.mxu0 0
    %616 = vmatprep.subr.bf16.mxu0 0
    %617 = vmatpush1.bf16.msra.mxu0 0
    %618 = vmatprep.subr.bf16.mxu0 0
    %619 = vmatpush1.bf16.msra.mxu0 0
    %620 = vmatprep.subr.bf16.mxu0 0
    %621 = vmatpush1.bf16.msra.mxu0 0
    %622 = vmatprep.subr.bf16.mxu0 0
    %623 = vmatpush1.bf16.msra.mxu0 0
    %624 = vmatprep.subr.bf16.mxu0 0
    %625 = vmatpush1.bf16.msra.mxu0 0
    %626 = vmatprep.mubr.bf16.mxu0 0
    %627 = vmatmul.mubr.bf16.gmra.mrb[0].mxu0 %v589
    %v628 = vpop.f32.mrb[0].mxu0
    %v629 = vadd.f32 0.0, %v628
    %v630 = vpop.f32.mrb[0].mxu0
    %v631 = vpop.f32.mrb[0].mxu0
    %v632 = vpop.f32.mrb[0].mxu0
    %633 = vdwg.mxu0
    %v634 = vpack.c.bf16 %v629, %v629
    %636 = vrot.lane.b32.xlu0 %v634, 24
    %v637 = vpop.permute.xlu0 %636
    %vm639 = vcmask 257216
    %640 = vst.msk [vmem:[#allocation3] sm:$0xf] %vm639, %v637
    %v641 = vld [vmem:[#allocation2] sm:$0xf0]
    %v643 = vrot.slane %v641, 4
    %644 = vrot.lane.b32.xlu0 %v643, 96
    %v645 = vpop.permute.xlu0 %644
    %v647 = vsel %vm173, %v643, 0
    %v650 = vsel %vm173, %v645, 0
    %652 = vmatprep.subr.bf16.mxu0 0
    %653 = vmatpush1.bf16.xpose.msra.mxu0 %v650
    %654 = vmatprep.subr.bf16.mxu0 0
    %655 = vmatpush1.bf16.xpose.msra.mxu0 0
    %656 = vmatprep.subr.bf16.mxu0 0
    %657 = vmatpush1.bf16.xpose.msra.mxu0 0
    %658 = vmatprep.subr.bf16.mxu0 0
    %659 = vmatpush1.bf16.xpose.msra.mxu0 0
    %660 = vmatprep.subr.bf16.mxu0 0
    %661 = vmatpush1.bf16.xpose.msra.mxu0 0
    %662 = vmatprep.subr.bf16.mxu0 0
    %663 = vmatpush1.bf16.xpose.msra.mxu0 0
    %664 = vmatprep.subr.bf16.mxu0 0
    %665 = vmatpush1.bf16.xpose.msra.mxu0 0
    %666 = vmatprep.subr.bf16.mxu0 0
    %667 = vmatpush1.bf16.xpose.msra.mxu0 0
    %668 = vmatprep.subr.bf16.mxu0 0
    %669 = vmatpush1.bf16.xpose.msra.mxu0 0
    %670 = vmatprep.subr.bf16.mxu0 0
    %671 = vmatpush1.bf16.xpose.msra.mxu0 0
    %672 = vmatprep.subr.bf16.mxu0 0
    %673 = vmatpush1.bf16.xpose.msra.mxu0 0
    %674 = vmatprep.subr.bf16.mxu0 0
    %675 = vmatpush1.bf16.xpose.msra.mxu0 0
    %676 = vmatprep.subr.bf16.mxu0 0
    %677 = vmatpush1.bf16.xpose.msra.mxu0 0
    %678 = vmatprep.subr.bf16.mxu0 0
    %679 = vmatpush1.bf16.xpose.msra.mxu0 0
    %680 = vmatprep.subr.bf16.mxu0 0
    %681 = vmatpush1.bf16.xpose.msra.mxu0 0
    %682 = vmatprep.subr.bf16.mxu0 0
    %683 = vmatpush1.bf16.xpose.msra.mxu0 0
    %684 = vmatprep.mubr.bf16.mxu0 0
    %685 = vmatmul.mubr.bf16.gmra.mrb[0].mxu0 %v647
    %v686 = vpop.f32.mrb[0].mxu0
    %v687 = vadd.f32 %v51, %v686
    %v688 = vpop.f32.mrb[0].mxu0
    %v689 = vpop.f32.mrb[0].mxu0
    %v690 = vpop.f32.mrb[0].mxu0
    %691 = vdwg.mxu0
    %v692 = vsel %vm173, %v687, -inf
    %693 = vmax.xlane.f32.xlu0 %v692
    %v694 = vpop.xlane.xlu0 %693
    %v695 = vsub.f32 %v687, %v694
    %v696 = vmul.f32 %v695, 1.442695
    %v697 = vpow.pop %v696
    %v698 = vsel %vm173, %v697, 0.0
    %699 = vadd.xlane.f32.xlu0 %v698
    %v700 = vpop.xlane.xlu0 %699
    %v701 = vrcp.pop %v700
    %v702 = vmul.f32 %v697, %v701
    %v703 = vpack.c.bf16 %v702, %v702
    %704 = vrot.lane.b32.xlu0 %v643, 64
    %v705 = vpop.permute.xlu0 %704
    %v707 = vsel %vm173, %v703, 0
    %v710 = vsel %vm237, %v705, 0
    %712 = vmatprep.subr.bf16.mxu0 0
    %713 = vmatpush1.bf16.msra.mxu0 %v710
    %714 = vmatprep.subr.bf16.mxu0 0
    %715 = vmatpush1.bf16.msra.mxu0 0
    %716 = vmatprep.subr.bf16.mxu0 0
    %717 = vmatpush1.bf16.msra.mxu0 0
    %718 = vmatprep.subr.bf16.mxu0 0
    %719 = vmatpush1.bf16.msra.mxu0 0
    %720 = vmatprep.subr.bf16.mxu0 0
    %721 = vmatpush1.bf16.msra.mxu0 0
    %722 = vmatprep.subr.bf16.mxu0 0
    %723 = vmatpush1.bf16.msra.mxu0 0
    %724 = vmatprep.subr.bf16.mxu0 0
    %725 = vmatpush1.bf16.msra.mxu0 0
    %726 = vmatprep.subr.bf16.mxu0 0
    %727 = vmatpush1.bf16.msra.mxu0 0
    %728 = vmatprep.subr.bf16.mxu0 0
    %729 = vmatpush1.bf16.msra.mxu0 0
    %730 = vmatprep.subr.bf16.mxu0 0
    %731 = vmatpush1.bf16.msra.mxu0 0
    %732 = vmatprep.subr.bf16.mxu0 0
    %733 = vmatpush1.bf16.msra.mxu0 0
    %734 = vmatprep.subr.bf16.mxu0 0
    %735 = vmatpush1.bf16.msra.mxu0 0
    %736 = vmatprep.subr.bf16.mxu0 0
    %737 = vmatpush1.bf16.msra.mxu0 0
    %738 = vmatprep.subr.bf16.mxu0 0
    %739 = vmatpush1.bf16.msra.mxu0 0
    %740 = vmatprep.subr.bf16.mxu0 0
    %741 = vmatpush1.bf16.msra.mxu0 0
    %742 = vmatprep.subr.bf16.mxu0 0
    %743 = vmatpush1.bf16.msra.mxu0 0
    %744 = vmatprep.mubr.bf16.mxu0 0
    %745 = vmatmul.mubr.bf16.gmra.mrb[0].mxu0 %v707
    %v746 = vpop.f32.mrb[0].mxu0
    %v747 = vadd.f32 0.0, %v746
    %v748 = vpop.f32.mrb[0].mxu0
    %v749 = vpop.f32.mrb[0].mxu0
    %v750 = vpop.f32.mrb[0].mxu0
    %751 = vdwg.mxu0
    %v752 = vpack.c.bf16 %v747, %v747
    %v754 = vrot.slane %v752, 4
    %vm756 = vcmask 64516
    %757 = vst.msk [vmem:[#allocation3] sm:$0xf0] %vm756, %v754
    %v758 = vld [vmem:[#allocation2] sm:$0xf0]
    %v760 = vrot.slane %v758, 4
    %761 = vrot.lane.b32.xlu0 %v760, 120
    %v762 = vpop.permute.xlu0 %761
    %763 = vrot.lane.b32.xlu0 %v760, 88
    %v764 = vpop.permute.xlu0 %763
    %v766 = vsel %vm173, %v762, 0
    %v769 = vsel %vm173, %v764, 0
    %771 = vmatprep.subr.bf16.mxu0 0
    %772 = vmatpush1.bf16.xpose.msra.mxu0 %v769
    %773 = vmatprep.subr.bf16.mxu0 0
    %774 = vmatpush1.bf16.xpose.msra.mxu0 0
    %775 = vmatprep.subr.bf16.mxu0 0
    %776 = vmatpush1.bf16.xpose.msra.mxu0 0
    %777 = vmatprep.subr.bf16.mxu0 0
    %778 = vmatpush1.bf16.xpose.msra.mxu0 0
    %779 = vmatprep.subr.bf16.mxu0 0
    %780 = vmatpush1.bf16.xpose.msra.mxu0 0
    %781 = vmatprep.subr.bf16.mxu0 0
    %782 = vmatpush1.bf16.xpose.msra.mxu0 0
    %783 = vmatprep.subr.bf16.mxu0 0
    %784 = vmatpush1.bf16.xpose.msra.mxu0 0
    %785 = vmatprep.subr.bf16.mxu0 0
    %786 = vmatpush1.bf16.xpose.msra.mxu0 0
    %787 = vmatprep.subr.bf16.mxu0 0
    %788 = vmatpush1.bf16.xpose.msra.mxu0 0
    %789 = vmatprep.subr.bf16.mxu0 0
    %790 = vmatpush1.bf16.xpose.msra.mxu0 0
    %791 = vmatprep.subr.bf16.mxu0 0
    %792 = vmatpush1.bf16.xpose.msra.mxu0 0
    %793 = vmatprep.subr.bf16.mxu0 0
    %794 = vmatpush1.bf16.xpose.msra.mxu0 0
    %795 = vmatprep.subr.bf16.mxu0 0
    %796 = vmatpush1.bf16.xpose.msra.mxu0 0
    %797 = vmatprep.subr.bf16.mxu0 0
    %798 = vmatpush1.bf16.xpose.msra.mxu0 0
    %799 = vmatprep.subr.bf16.mxu0 0
    %800 = vmatpush1.bf16.xpose.msra.mxu0 0
    %801 = vmatprep.subr.bf16.mxu0 0
    %802 = vmatpush1.bf16.xpose.msra.mxu0 0
    %803 = vmatprep.mubr.bf16.mxu0 0
    %804 = vmatmul.mubr.bf16.gmra.mrb[0].mxu0 %v766
    %v805 = vpop.f32.mrb[0].mxu0
    %v806 = vadd.f32 %v51, %v805
    %v807 = vpop.f32.mrb[0].mxu0
    %v808 = vpop.f32.mrb[0].mxu0
    %v809 = vpop.f32.mrb[0].mxu0
    %810 = vdwg.mxu0
    %v811 = vsel %vm173, %v806, -inf
    %812 = vmax.xlane.f32.xlu0 %v811
    %v813 = vpop.xlane.xlu0 %812
    %v814 = vsub.f32 %v806, %v813
    %v815 = vmul.f32 %v814, 1.442695
    %v816 = vpow.pop %v815
    %v817 = vsel %vm173, %v816, 0.0
    %818 = vadd.xlane.f32.xlu0 %v817
    %v819 = vpop.xlane.xlu0 %818
    %v820 = vrcp.pop %v819
    %v821 = vmul.f32 %v816, %v820
    %v822 = vpack.c.bf16 %v821, %v821
    %823 = vrot.lane.b32.xlu0 %v760, 56
    %v824 = vpop.permute.xlu0 %823
    %v826 = vsel %vm173, %v822, 0
    %v829 = vsel %vm237, %v824, 0
    %831 = vmatprep.subr.bf16.mxu0 0
    %832 = vmatpush1.bf16.msra.mxu0 %v829
    %833 = vmatprep.subr.bf16.mxu0 0
    %834 = vmatpush1.bf16.msra.mxu0 0
    %835 = vmatprep.subr.bf16.mxu0 0
    %836 = vmatpush1.bf16.msra.mxu0 0
    %837 = vmatprep.subr.bf16.mxu0 0
    %838 = vmatpush1.bf16.msra.mxu0 0
    %839 = vmatprep.subr.bf16.mxu0 0
    %840 = vmatpush1.bf16.msra.mxu0 0
    %841 = vmatprep.subr.bf16.mxu0 0
    %842 = vmatpush1.bf16.msra.mxu0 0
    %843 = vmatprep.subr.bf16.mxu0 0
    %844 = vmatpush1.bf16.msra.mxu0 0
    %845 = vmatprep.subr.bf16.mxu0 0
    %846 = vmatpush1.bf16.msra.mxu0 0
    %847 = vmatprep.subr.bf16.mxu0 0
    %848 = vmatpush1.bf16.msra.mxu0 0
    %849 = vmatprep.subr.bf16.mxu0 0
    %850 = vmatpush1.bf16.msra.mxu0 0
    %851 = vmatprep.subr.bf16.mxu0 0
    %852 = vmatpush1.bf16.msra.mxu0 0
    %853 = vmatprep.subr.bf16.mxu0 0
    %854 = vmatpush1.bf16.msra.mxu0 0
    %855 = vmatprep.subr.bf16.mxu0 0
    %856 = vmatpush1.bf16.msra.mxu0 0
    %857 = vmatprep.subr.bf16.mxu0 0
    %858 = vmatpush1.bf16.msra.mxu0 0
    %859 = vmatprep.subr.bf16.mxu0 0
    %860 = vmatpush1.bf16.msra.mxu0 0
    %861 = vmatprep.subr.bf16.mxu0 0
    %862 = vmatpush1.bf16.msra.mxu0 0
    %863 = vmatprep.mubr.bf16.mxu0 0
    %864 = vmatmul.mubr.bf16.gmra.mrb[0].mxu0 %v826
    %v865 = vpop.f32.mrb[0].mxu0
    %v866 = vadd.f32 0.0, %v865
    %v867 = vpop.f32.mrb[0].mxu0
    %v868 = vpop.f32.mrb[0].mxu0
    %v869 = vpop.f32.mrb[0].mxu0
    %870 = vdwg.mxu0
    %v871 = vpack.c.bf16 %v866, %v866
    %v873 = vrot.slane %v871, 4
    %874 = vrot.lane.b32.xlu0 %v873, 8
    %v875 = vpop.permute.xlu0 %874
    %vm877 = vcmask 130116
    %878 = vst.msk [vmem:[#allocation3] sm:$0xf0] %vm877, %v875
    %v879 = vld [vmem:[#allocation2] sm:$0xf0]
    %v881 = vrot.slane %v879, 4
    %882 = vrot.lane.b32.xlu0 %v881, 112
    %v883 = vpop.permute.xlu0 %882
    %884 = vrot.lane.b32.xlu0 %v881, 80
    %v885 = vpop.permute.xlu0 %884
    %v887 = vsel %vm173, %v883, 0
    %v890 = vsel %vm173, %v885, 0
    %892 = vmatprep.subr.bf16.mxu0 0
    %893 = vmatpush1.bf16.xpose.msra.mxu0 %v890
    %894 = vmatprep.subr.bf16.mxu0 0
    %895 = vmatpush1.bf16.xpose.msra.mxu0 0
    %896 = vmatprep.subr.bf16.mxu0 0
    %897 = vmatpush1.bf16.xpose.msra.mxu0 0
    %898 = vmatprep.subr.bf16.mxu0 0
    %899 = vmatpush1.bf16.xpose.msra.mxu0 0
    %900 = vmatprep.subr.bf16.mxu0 0
    %901 = vmatpush1.bf16.xpose.msra.mxu0 0
    %902 = vmatprep.subr.bf16.mxu0 0
    %903 = vmatpush1.bf16.xpose.msra.mxu0 0
    %904 = vmatprep.subr.bf16.mxu0 0
    %905 = vmatpush1.bf16.xpose.msra.mxu0 0
    %906 = vmatprep.subr.bf16.mxu0 0
    %907 = vmatpush1.bf16.xpose.msra.mxu0 0
    %908 = vmatprep.subr.bf16.mxu0 0
    %909 = vmatpush1.bf16.xpose.msra.mxu0 0
    %910 = vmatprep.subr.bf16.mxu0 0
    %911 = vmatpush1.bf16.xpose.msra.mxu0 0
    %912 = vmatprep.subr.bf16.mxu0 0
    %913 = vmatpush1.bf16.xpose.msra.mxu0 0
    %914 = vmatprep.subr.bf16.mxu0 0
    %915 = vmatpush1.bf16.xpose.msra.mxu0 0
    %916 = vmatprep.subr.bf16.mxu0 0
    %917 = vmatpush1.bf16.xpose.msra.mxu0 0
    %918 = vmatprep.subr.bf16.mxu0 0
    %919 = vmatpush1.bf16.xpose.msra.mxu0 0
    %920 = vmatprep.subr.bf16.mxu0 0
    %921 = vmatpush1.bf16.xpose.msra.mxu0 0
    %922 = vmatprep.subr.bf16.mxu0 0
    %923 = vmatpush1.bf16.xpose.msra.mxu0 0
    %924 = vmatprep.mubr.bf16.mxu0 0
    %925 = vmatmul.mubr.bf16.gmra.mrb[0].mxu0 %v887
    %v926 = vpop.f32.mrb[0].mxu0
    %v927 = vadd.f32 %v51, %v926
    %v928 = vpop.f32.mrb[0].mxu0
    %v929 = vpop.f32.mrb[0].mxu0
    %v930 = vpop.f32.mrb[0].mxu0
    %931 = vdwg.mxu0
    %v932 = vsel %vm173, %v927, -inf
    %933 = vmax.xlane.f32.xlu0 %v932
    %v934 = vpop.xlane.xlu0 %933
    %v935 = vsub.f32 %v927, %v934
    %v936 = vmul.f32 %v935, 1.442695
    %v937 = vpow.pop %v936
    %v938 = vsel %vm173, %v937, 0.0
    %939 = vadd.xlane.f32.xlu0 %v938
    %v940 = vpop.xlane.xlu0 %939
    %v941 = vrcp.pop %v940
    %v942 = vmul.f32 %v937, %v941
    %v943 = vpack.c.bf16 %v942, %v942
    %944 = vrot.lane.b32.xlu0 %v881, 48
    %v945 = vpop.permute.xlu0 %944
    %v947 = vsel %vm173, %v943, 0
    %v950 = vsel %vm237, %v945, 0
    %952 = vmatprep.subr.bf16.mxu0 0
    %953 = vmatpush1.bf16.msra.mxu0 %v950
    %954 = vmatprep.subr.bf16.mxu0 0
    %955 = vmatpush1.bf16.msra.mxu0 0
    %956 = vmatprep.subr.bf16.mxu0 0
    %957 = vmatpush1.bf16.msra.mxu0 0
    %958 = vmatprep.subr.bf16.mxu0 0
    %959 = vmatpush1.bf16.msra.mxu0 0
    %960 = vmatprep.subr.bf16.mxu0 0
    %961 = vmatpush1.bf16.msra.mxu0 0
    %962 = vmatprep.subr.bf16.mxu0 0
    %963 = vmatpush1.bf16.msra.mxu0 0
    %964 = vmatprep.subr.bf16.mxu0 0
    %965 = vmatpush1.bf16.msra.mxu0 0
    %966 = vmatprep.subr.bf16.mxu0 0
    %967 = vmatpush1.bf16.msra.mxu0 0
    %968 = vmatprep.subr.bf16.mxu0 0
    %969 = vmatpush1.bf16.msra.mxu0 0
    %970 = vmatprep.subr.bf16.mxu0 0
    %971 = vmatpush1.bf16.msra.mxu0 0
    %972 = vmatprep.subr.bf16.mxu0 0
    %973 = vmatpush1.bf16.msra.mxu0 0
    %974 = vmatprep.subr.bf16.mxu0 0
    %975 = vmatpush1.bf16.msra.mxu0 0
    %976 = vmatprep.subr.bf16.mxu0 0
    %977 = vmatpush1.bf16.msra.mxu0 0
    %978 = vmatprep.subr.bf16.mxu0 0
    %979 = vmatpush1.bf16.msra.mxu0 0
    %980 = vmatprep.subr.bf16.mxu0 0
    %981 = vmatpush1.bf16.msra.mxu0 0
    %982 = vmatprep.subr.bf16.mxu0 0
    %983 = vmatpush1.bf16.msra.mxu0 0
    %984 = vmatprep.mubr.bf16.mxu0 0
    %985 = vmatmul.mubr.bf16.gmra.mrb[0].mxu0 %v947
    %v986 = vpop.f32.mrb[0].mxu0
    %v987 = vadd.f32 0.0, %v986
    %v988 = vpop.f32.mrb[0].mxu0
    %v989 = vpop.f32.mrb[0].mxu0
    %v990 = vpop.f32.mrb[0].mxu0
    %991 = vdwg.mxu0
    %v992 = vpack.c.bf16 %v987, %v987
    %v994 = vrot.slane %v992, 4
    %995 = vrot.lane.b32.xlu0 %v994, 16
    %v996 = vpop.permute.xlu0 %995
    %vm998 = vcmask 195716
    %999 = vst.msk [vmem:[#allocation3] sm:$0xf0] %vm998, %v996
    %v1000 = vld [vmem:[#allocation2] sm:$0xf0]
    %v1002 = vrot.slane %v1000, 4
    %1003 = vrot.lane.b32.xlu0 %v1002, 104
    %v1004 = vpop.permute.xlu0 %1003
    %1005 = vrot.lane.b32.xlu0 %v1002, 72
    %v1006 = vpop.permute.xlu0 %1005
    %v1008 = vsel %vm173, %v1004, 0
    %v1011 = vsel %vm173, %v1006, 0
    %1013 = vmatprep.subr.bf16.mxu0 0
    %1014 = vmatpush1.bf16.xpose.msra.mxu0 %v1011
    %1015 = vmatprep.subr.bf16.mxu0 0
    %1016 = vmatpush1.bf16.xpose.msra.mxu0 0
    %1017 = vmatprep.subr.bf16.mxu0 0
    %1018 = vmatpush1.bf16.xpose.msra.mxu0 0
    %1019 = vmatprep.subr.bf16.mxu0 0
    %1020 = vmatpush1.bf16.xpose.msra.mxu0 0
    %1021 = vmatprep.subr.bf16.mxu0 0
    %1022 = vmatpush1.bf16.xpose.msra.mxu0 0
    %1023 = vmatprep.subr.bf16.mxu0 0
    %1024 = vmatpush1.bf16.xpose.msra.mxu0 0
    %1025 = vmatprep.subr.bf16.mxu0 0
    %1026 = vmatpush1.bf16.xpose.msra.mxu0 0
    %1027 = vmatprep.subr.bf16.mxu0 0
    %1028 = vmatpush1.bf16.xpose.msra.mxu0 0
    %1029 = vmatprep.subr.bf16.mxu0 0
    %1030 = vmatpush1.bf16.xpose.msra.mxu0 0
    %1031 = vmatprep.subr.bf16.mxu0 0
    %1032 = vmatpush1.bf16.xpose.msra.mxu0 0
    %1033 = vmatprep.subr.bf16.mxu0 0
    %1034 = vmatpush1.bf16.xpose.msra.mxu0 0
    %1035 = vmatprep.subr.bf16.mxu0 0
    %1036 = vmatpush1.bf16.xpose.msra.mxu0 0
    %1037 = vmatprep.subr.bf16.mxu0 0
    %1038 = vmatpush1.bf16.xpose.msra.mxu0 0
    %1039 = vmatprep.subr.bf16.mxu0 0
    %1040 = vmatpush1.bf16.xpose.msra.mxu0 0
    %1041 = vmatprep.subr.bf16.mxu0 0
    %1042 = vmatpush1.bf16.xpose.msra.mxu0 0
    %1043 = vmatprep.subr.bf16.mxu0 0
    %1044 = vmatpush1.bf16.xpose.msra.mxu0 0
    %1045 = vmatprep.mubr.bf16.mxu0 0
    %1046 = vmatmul.mubr.bf16.gmra.mrb[0].mxu0 %v1008
    %v1047 = vpop.f32.mrb[0].mxu0
    %v1048 = vadd.f32 %v51, %v1047
    %v1049 = vpop.f32.mrb[0].mxu0
    %v1050 = vpop.f32.mrb[0].mxu0
    %v1051 = vpop.f32.mrb[0].mxu0
    %1052 = vdwg.mxu0
    %v1053 = vsel %vm173, %v1048, -inf
    %1054 = vmax.xlane.f32.xlu0 %v1053
    %v1055 = vpop.xlane.xlu0 %1054
    %v1056 = vsub.f32 %v1048, %v1055
    %v1057 = vmul.f32 %v1056, 1.442695
    %v1058 = vpow.pop %v1057
    %v1059 = vsel %vm173, %v1058, 0.0
    %1060 = vadd.xlane.f32.xlu0 %v1059
    %v1061 = vpop.xlane.xlu0 %1060
    %v1062 = vrcp.pop %v1061
    %v1063 = vmul.f32 %v1058, %v1062
    %v1064 = vpack.c.bf16 %v1063, %v1063
    %1065 = vrot.lane.b32.xlu0 %v1002, 40
    %v1066 = vpop.permute.xlu0 %1065
    %v1068 = vsel %vm173, %v1064, 0
    %v1071 = vsel %vm237, %v1066, 0
    %1073 = vmatprep.subr.bf16.mxu0 0
    %1074 = vmatpush1.bf16.msra.mxu0 %v1071
    %1075 = vmatprep.subr.bf16.mxu0 0
    %1076 = vmatpush1.bf16.msra.mxu0 0
    %1077 = vmatprep.subr.bf16.mxu0 0
    %1078 = vmatpush1.bf16.msra.mxu0 0
    %1079 = vmatprep.subr.bf16.mxu0 0
    %1080 = vmatpush1.bf16.msra.mxu0 0
    %1081 = vmatprep.subr.bf16.mxu0 0
    %1082 = vmatpush1.bf16.msra.mxu0 0
    %1083 = vmatprep.subr.bf16.mxu0 0
    %1084 = vmatpush1.bf16.msra.mxu0 0
    %1085 = vmatprep.subr.bf16.mxu0 0
    %1086 = vmatpush1.bf16.msra.mxu0 0
    %1087 = vmatprep.subr.bf16.mxu0 0
    %1088 = vmatpush1.bf16.msra.mxu0 0
    %1089 = vmatprep.subr.bf16.mxu0 0
    %1090 = vmatpush1.bf16.msra.mxu0 0
    %1091 = vmatprep.subr.bf16.mxu0 0
    %1092 = vmatpush1.bf16.msra.mxu0 0
    %1093 = vmatprep.subr.bf16.mxu0 0
    %1094 = vmatpush1.bf16.msra.mxu0 0
    %1095 = vmatprep.subr.bf16.mxu0 0
    %1096 = vmatpush1.bf16.msra.mxu0 0
    %1097 = vmatprep.subr.bf16.mxu0 0
    %1098 = vmatpush1.bf16.msra.mxu0 0
    %1099 = vmatprep.subr.bf16.mxu0 0
    %1100 = vmatpush1.bf16.msra.mxu0 0
    %1101 = vmatprep.subr.bf16.mxu0 0
    %1102 = vmatpush1.bf16.msra.mxu0 0
    %1103 = vmatprep.subr.bf16.mxu0 0
    %1104 = vmatpush1.bf16.msra.mxu0 0
    %1105 = vmatprep.mubr.bf16.mxu0 0
    %1106 = vmatmul.mubr.bf16.gmra.mrb[0].mxu0 %v1068
    %v1107 = vpop.f32.mrb[0].mxu0
    %v1108 = vadd.f32 0.0, %v1107
    %v1109 = vpop.f32.mrb[0].mxu0
    %v1110 = vpop.f32.mrb[0].mxu0
    %v1111 = vpop.f32.mrb[0].mxu0
    %1112 = vdwg.mxu0
    %v1113 = vpack.c.bf16 %v1108, %v1108
    %v1115 = vrot.slane %v1113, 4
    %1116 = vrot.lane.b32.xlu0 %v1115, 24
    %v1117 = vpop.permute.xlu0 %1116
    %vm1119 = vcmask 261316
    %1120 = vst.msk [vmem:[#allocation3] sm:$0xf0] %vm1119, %v1117
    %v1121 = vld [vmem:[#allocation3] sm:$0xff]
    %v1122 = vld [vmem:[%s6] sm:$0xf]
    %v1123 = vld [vmem:[%s6 + $0x4] sm:$0xf]
    %v1124 = vld [vmem:[%s6 + $0x8] sm:$0xf]
    %v1125 = vld [vmem:[%s6 + $0xc] sm:$0xf]
    %v1126 = vld [vmem:[%s7] sm:$0x1]
    %v1128 = vlaneseq
    %v1129 = vshrl.u32 %v1128, 7
    %v1130 = vsub.s32 0, %v1129
    %v1131 = vrot.slane %v1126, %v1130
    %v1137 = vunpack.c.l.b16 %v1122
    %v1138 = vunpack.c.l.b16 %v1123
    %v1139 = vunpack.c.l.b16 %v1124
    %v1140 = vunpack.c.l.b16 %v1125
    %v1141 = vpack.c.b16 %v1138, %v1137
    %v1142 = vpack.c.b16 %v1140, %v1139
    %v1146 = vsel %vm54, %v1121, 0
    %1148 = vmatprep.subr.bf16.mxu0 0
    %1149 = vmatpush1.bf16.msra.mxu0 %v1141
    %1150 = vmatprep.subr.bf16.mxu0 0
    %1151 = vmatpush1.bf16.msra.mxu0 %v1142
    %1152 = vmatprep.subr.bf16.mxu0 0
    %1153 = vmatpush1.bf16.msra.mxu0 0
    %1154 = vmatprep.subr.bf16.mxu0 0
    %1155 = vmatpush1.bf16.msra.mxu0 0
    %1156 = vmatprep.subr.bf16.mxu0 0
    %1157 = vmatpush1.bf16.msra.mxu0 0
    %1158 = vmatprep.subr.bf16.mxu0 0
    %1159 = vmatpush1.bf16.msra.mxu0 0
    %1160 = vmatprep.subr.bf16.mxu0 0
    %1161 = vmatpush1.bf16.msra.mxu0 0
    %1162 = vmatprep.subr.bf16.mxu0 0
    %1163 = vmatpush1.bf16.msra.mxu0 0
    %1164 = vmatprep.subr.bf16.mxu0 0
    %1165 = vmatpush1.bf16.msra.mxu0 0
    %1166 = vmatprep.subr.bf16.mxu0 0
    %1167 = vmatpush1.bf16.msra.mxu0 0
    %1168 = vmatprep.subr.bf16.mxu0 0
    %1169 = vmatpush1.bf16.msra.mxu0 0
    %1170 = vmatprep.subr.bf16.mxu0 0
    %1171 = vmatpush1.bf16.msra.mxu0 0
    %1172 = vmatprep.subr.bf16.mxu0 0
    %1173 = vmatpush1.bf16.msra.mxu0 0
    %1174 = vmatprep.subr.bf16.mxu0 0
    %1175 = vmatpush1.bf16.msra.mxu0 0
    %1176 = vmatprep.subr.bf16.mxu0 0
    %1177 = vmatpush1.bf16.msra.mxu0 0
    %1178 = vmatprep.subr.bf16.mxu0 0
    %1179 = vmatpush1.bf16.msra.mxu0 0
    %1180 = vmatprep.mubr.bf16.mxu0 0
    %1181 = vmatmul.mubr.bf16.gmra.mrb[0].mxu0 %v1146
    %v1182 = vpop.f32.mrb[0].mxu0
    %v1183 = vadd.f32 %v1131, %v1182
    %v1184 = vpop.f32.mrb[0].mxu0
    %v1185 = vpop.f32.mrb[0].mxu0
    %v1186 = vadd.f32 %v1131, %v1185
    %v1187 = vpop.f32.mrb[0].mxu0
    %1188 = vdwg.mxu0
    %v1189 = vadd.f32 %v49, %v1183
    %v1190 = vadd.f32 %v50, %v1186
    %v1191 = vld [vmem:[%s8] sm:$0x1]
    %v1192 = vld [vmem:[%s9] sm:$0x1]
    %v1193 = vsel %vm54, %v1189, 0.0
    %1194 = vadd.xlane.f32.xlu0 %v1193
    %v1195 = vpop.xlane.xlu0 %1194
    %v1196 = vsel %vm54, %v1190, 0.0
    %1197 = vadd.xlane.f32.xlu0 %v1196
    %v1198 = vpop.xlane.xlu0 %1197
    %v1199 = vmul.f32 %v1195, %v61
    %v1200 = vmul.f32 %v1198, %v61
    %v1201 = vsub.f32 %v1189, %v1199
    %v1202 = vsub.f32 %v1190, %v1200
    %v1203 = vmul.f32 %v1201, %v1201
    %v1204 = vmul.f32 %v1202, %v1202
    %v1205 = vsel %vm54, %v1203, 0.0
    %1206 = vadd.xlane.f32.xlu0 %v1205
    %v1207 = vpop.xlane.xlu0 %1206
    %v1208 = vsel %vm54, %v1204, 0.0
    %1209 = vadd.xlane.f32.xlu0 %v1208
    %v1210 = vpop.xlane.xlu0 %1209
    %v1211 = vmul.f32 %v1207, %v61
    %v1212 = vmul.f32 %v1210, %v61
    %v1213 = vadd.f32 %v1211, 1e-05
    %v1214 = vadd.f32 %v1212, 1e-05
    %v1215 = vrsqrt.pop %v1213
    %v1216 = vrsqrt.pop %v1214
    %v1217 = vmul.f32 %v1201, %v1215
    %v1218 = vmul.f32 %v1202, %v1216
    %v1220 = vlaneseq
    %v1221 = vshrl.u32 %v1220, 7
    %v1222 = vsub.s32 0, %v1221
    %v1223 = vrot.slane %v1191, %v1222
    %v1225 = vmul.f32 %v1217, %v1223
    %v1226 = vmul.f32 %v1218, %v1223
    %v1228 = vlaneseq
    %v1229 = vshrl.u32 %v1228, 7
    %v1230 = vsub.s32 0, %v1229
    %v1231 = vrot.slane %v1192, %v1230
    %v1233 = vadd.f32 %v1225, %v1231
    %v1234 = vadd.f32 %v1226, %v1231
    %v1235 = vpack.c.bf16 %v1234, %v1233
    %v1236 = vld [vmem:[%s10] sm:$0xf]
    %v1237 = vld [vmem:[%s10 + $0x4] sm:$0xf]
    %v1238 = vld [vmem:[%s10 + $0x8] sm:$0xf]
    %v1239 = vld [vmem:[%s10 + $0xc] sm:$0xf]
    %v1240 = vld [vmem:[%s11] sm:$0x1]
    %v1242 = vlaneseq
    %v1243 = vshrl.u32 %v1242, 7
    %v1244 = vsub.s32 0, %v1243
    %v1245 = vrot.slane %v1240, %v1244
    %v1251 = vunpack.c.l.b16 %v1236
    %v1252 = vunpack.c.l.b16 %v1237
    %v1253 = vunpack.c.l.b16 %v1238
    %v1254 = vunpack.c.l.b16 %v1239
    %v1255 = vpack.c.b16 %v1252, %v1251
    %v1256 = vpack.c.b16 %v1254, %v1253
    %v1260 = vsel %vm54, %v1235, 0
    %1262 = vmatprep.subr.bf16.mxu0 0
    %1263 = vmatpush1.bf16.msra.mxu0 %v1255
    %1264 = vmatprep.subr.bf16.mxu0 0
    %1265 = vmatpush1.bf16.msra.mxu0 %v1256
    %1266 = vmatprep.subr.bf16.mxu0 0
    %1267 = vmatpush1.bf16.msra.mxu0 0
    %1268 = vmatprep.subr.bf16.mxu0 0
    %1269 = vmatpush1.bf16.msra.mxu0 0
    %1270 = vmatprep.subr.bf16.mxu0 0
    %1271 = vmatpush1.bf16.msra.mxu0 0
    %1272 = vmatprep.subr.bf16.mxu0 0
    %1273 = vmatpush1.bf16.msra.mxu0 0
    %1274 = vmatprep.subr.bf16.mxu0 0
    %1275 = vmatpush1.bf16.msra.mxu0 0
    %1276 = vmatprep.subr.bf16.mxu0 0
    %1277 = vmatpush1.bf16.msra.mxu0 0
    %1278 = vmatprep.subr.bf16.mxu0 0
    %1279 = vmatpush1.bf16.msra.mxu0 0
    %1280 = vmatprep.subr.bf16.mxu0 0
    %1281 = vmatpush1.bf16.msra.mxu0 0
    %1282 = vmatprep.subr.bf16.mxu0 0
    %1283 = vmatpush1.bf16.msra.mxu0 0
    %1284 = vmatprep.subr.bf16.mxu0 0
    %1285 = vmatpush1.bf16.msra.mxu0 0
    %1286 = vmatprep.subr.bf16.mxu0 0
    %1287 = vmatpush1.bf16.msra.mxu0 0
    %1288 = vmatprep.subr.bf16.mxu0 0
    %1289 = vmatpush1.bf16.msra.mxu0 0
    %1290 = vmatprep.subr.bf16.mxu0 0
    %1291 = vmatpush1.bf16.msra.mxu0 0
    %1292 = vmatprep.subr.bf16.mxu0 0
    %1293 = vmatpush1.bf16.msra.mxu0 0
    %1294 = vmatprep.mubr.bf16.mxu0 0
    %1295 = vmatmul.mubr.bf16.gmra.mrb[0].mxu0 %v1260
    %v1296 = vpop.f32.mrb[0].mxu0
    %v1297 = vadd.f32 %v1245, %v1296
    %v1298 = vpop.f32.mrb[0].mxu0
    %v1299 = vpop.f32.mrb[0].mxu0
    %v1300 = vadd.f32 %v1245, %v1299
    %v1301 = vpop.f32.mrb[0].mxu0
    %1302 = vdwg.mxu0
    %v1303 = vmul.f32 %v1297, 0.5
    %v1304 = vmul.f32 %v1300, 0.5
    %v1305 = vmul.f32 %v1297, 0.70710677
    %v1306 = vmul.f32 %v1300, 0.70710677
    %v1307 = verf.f32.pop %v1305
    %v1308 = verf.f32.pop %v1306
    %v1309 = vadd.f32 %v1307, 1.0
    %v1310 = vadd.f32 %v1308, 1.0
    %v1311 = vmul.f32 %v1303, %v1309
    %v1312 = vmul.f32 %v1304, %v1310
    %v1313 = vpack.c.bf16 %v1312, %v1311
    %v1314 = vld [vmem:[%s12] sm:$0xf]
    %v1315 = vld [vmem:[%s12 + $0x4] sm:$0xf]
    %v1316 = vld [vmem:[%s12 + $0x8] sm:$0xf]
    %v1317 = vld [vmem:[%s12 + $0xc] sm:$0xf]
    %v1318 = vld [vmem:[%s12 + $0x10] sm:$0xf]
    %v1319 = vld [vmem:[%s12 + $0x14] sm:$0xf]
    %v1320 = vld [vmem:[%s12 + $0x18] sm:$0xf]
    %v1321 = vld [vmem:[%s12 + $0x1c] sm:$0xf]
    %v1322 = vld [vmem:[%s12 + $0x20] sm:$0xf]
    %v1323 = vld [vmem:[%s12 + $0x24] sm:$0xf]
    %v1324 = vld [vmem:[%s12 + $0x28] sm:$0xf]
    %v1325 = vld [vmem:[%s12 + $0x2c] sm:$0xf]
    %v1326 = vld [vmem:[%s12 + $0x30] sm:$0xf]
    %v1327 = vld [vmem:[%s12 + $0x34] sm:$0xf]
    %v1328 = vld [vmem:[%s12 + $0x38] sm:$0xf]
    %v1329 = vld [vmem:[%s12 + $0x3c] sm:$0xf]
    %v1330 = vld [vmem:[%s13] sm:$0x1]
    %v1332 = vlaneseq
    %v1333 = vshrl.u32 %v1332, 7
    %v1334 = vsub.s32 0, %v1333
    %v1335 = vrot.slane %v1330, %v1334
    %v1353 = vunpack.c.l.b16 %v1314
    %v1354 = vunpack.c.l.b16 %v1315
    %v1355 = vunpack.c.l.b16 %v1316
    %v1356 = vunpack.c.l.b16 %v1317
    %v1357 = vunpack.c.l.b16 %v1318
    %v1358 = vunpack.c.l.b16 %v1319
    %v1359 = vunpack.c.l.b16 %v1320
    %v1360 = vunpack.c.l.b16 %v1321
    %v1361 = vunpack.c.l.b16 %v1322
    %v1362 = vunpack.c.l.b16 %v1323
    %v1363 = vunpack.c.l.b16 %v1324
    %v1364 = vunpack.c.l.b16 %v1325
    %v1365 = vunpack.c.l.b16 %v1326
    %v1366 = vunpack.c.l.b16 %v1327
    %v1367 = vunpack.c.l.b16 %v1328
    %v1368 = vunpack.c.l.b16 %v1329
    %v1369 = vpack.c.b16 %v1354, %v1353
    %v1370 = vpack.c.b16 %v1356, %v1355
    %v1371 = vpack.c.b16 %v1358, %v1357
    %v1372 = vpack.c.b16 %v1360, %v1359
    %v1373 = vpack.c.b16 %v1362, %v1361
    %v1374 = vpack.c.b16 %v1364, %v1363
    %v1375 = vpack.c.b16 %v1366, %v1365
    %v1376 = vpack.c.b16 %v1368, %v1367
    %1385 = vmatprep.subr.bf16.mxu0 0
    %1386 = vmatpush1.bf16.msra.mxu0 %v1369
    %1387 = vmatprep.subr.bf16.mxu0 0
    %1388 = vmatpush1.bf16.msra.mxu0 %v1370
    %1389 = vmatprep.subr.bf16.mxu0 0
    %1390 = vmatpush1.bf16.msra.mxu0 %v1371
    %1391 = vmatprep.subr.bf16.mxu0 0
    %1392 = vmatpush1.bf16.msra.mxu0 %v1372
    %1393 = vmatprep.subr.bf16.mxu0 0
    %1394 = vmatpush1.bf16.msra.mxu0 %v1373
    %1395 = vmatprep.subr.bf16.mxu0 0
    %1396 = vmatpush1.bf16.msra.mxu0 %v1374
    %1397 = vmatprep.subr.bf16.mxu0 0
    %1398 = vmatpush1.bf16.msra.mxu0 %v1375
    %1399 = vmatprep.subr.bf16.mxu0 0
    %1400 = vmatpush1.bf16.msra.mxu0 %v1376
    %1401 = vmatprep.subr.bf16.mxu0 0
    %1402 = vmatpush1.bf16.msra.mxu0 0
    %1403 = vmatprep.subr.bf16.mxu0 0
    %1404 = vmatpush1.bf16.msra.mxu0 0
    %1405 = vmatprep.subr.bf16.mxu0 0
    %1406 = vmatpush1.bf16.msra.mxu0 0
    %1407 = vmatprep.subr.bf16.mxu0 0
    %1408 = vmatpush1.bf16.msra.mxu0 0
    %1409 = vmatprep.subr.bf16.mxu0 0
    %1410 = vmatpush1.bf16.msra.mxu0 0
    %1411 = vmatprep.subr.bf16.mxu0 0
    %1412 = vmatpush1.bf16.msra.mxu0 0
    %1413 = vmatprep.subr.bf16.mxu0 0
    %1414 = vmatpush1.bf16.msra.mxu0 0
    %1415 = vmatprep.subr.bf16.mxu0 0
    %1416 = vmatpush1.bf16.msra.mxu0 0
    %1417 = vmatprep.mubr.bf16.mxu0 0
    %1418 = vmatmul.mubr.bf16.gmra.mrb[0].mxu0 %v1313
    %v1419 = vpop.f32.mrb[0].mxu0
    %v1420 = vadd.f32 %v1335, %v1419
    %v1421 = vpop.f32.mrb[0].mxu0
    %v1422 = vpop.f32.mrb[0].mxu0
    %v1423 = vadd.f32 %v1335, %v1422
    %v1424 = vpop.f32.mrb[0].mxu0
    %1425 = vdwg.mxu0
    %v1426 = vadd.f32 %v1189, %v1420
    %v1427 = vadd.f32 %v1190, %v1423
    %1428 = vst.msk [vmem:[#allocation4] sm:$0xff] %vm54, %v1426
    %1429 = vst.msk [vmem:[#allocation4 + $0x8] sm:$0xff] %vm54, %v1427
    // Predicated region
    $region58: #{tpu_custom_call.1} parent=1 // pred_check
      _
    $region59: #{tpu_custom_call.1} parent=1 // pred_check_branch
      %1431 = sbr.rel (0) target = $region61
    $region60: #{tpu_custom_call.1} parent=1 // pred_region
      %s1433 = ssub.s32 256, 256
      %1434 = vsyncadd [#allocation5], %s1433
      %s1435 = sshll.u32 [#allocation4], 4
      %s1436 = int_to_ptr.vmem [resolvable:$true] %s1435
      %1441 = dma.vmem_to_hbm [thread:$0]  %s1436, 256, %s14, [#allocation5], 128, 128, 8
    $region61: #{tpu_custom_call.1} parent=1 // pred_fallthru
      _
    // Predicated region
    $region62: #{tpu_custom_call.1} parent=1 // pred_check
      _
    $region63: #{tpu_custom_call.1} parent=1 // pred_check_branch
      %1443 = sbr.rel (0) target = $region65
    $region64: #{tpu_custom_call.1} parent=1 // pred_region
      %1444 = dma.done [#allocation5], 256
    $region65: #{tpu_custom_call.1} parent=1 // pred_fallthru
      _
    %1445 = vsyncpa [#allocation5], 1

</llo_original>
